<compile_context>
chip_gen: v5e
topology: v5e:2x2
jax: 0.10.0
libtpu: 0.0.40
codegen_flags: <defaults>
</compile_context>

<pallas_src>
import functools

import jax
import jax.numpy as jnp
from jax.experimental import pallas as pl
from jax.experimental.pallas import tpu as pltpu

DW_K = 5        # cv2 depthwise kernel size
DW_PAD = 2      # 'same' padding for k=5
BN_EPS = 1e-5
MXU_MIN_C1 = 16  # contraction size at which cv1 moves onto the MXU


def _ghost_conv_kernel(H, W, lpad,
                       w1_ref, b1_ref, w2_ref, b2_ref,
                       x_ref, o_ref, pf_ref):
    # w1_ref : (tc, c1)            folded 1x1 conv (+BN) weight           (VMEM)
    # b1_ref : (tc, 1)             folded conv+BN bias
    # w2_ref : (tc, 25)            folded depthwise 5x5 weight, taps dy*5+dx
    # b2_ref : (tc, 1)             folded conv+BN bias
    # x_ref  : (c1, H*W)           one input image, spatially flattened
    # o_ref  : (2, tc, H*W)        output block: [0]=y, [1]=z
    # pf_ref : (tc, lpad+H*W+rpad) scratch: y with zeroed 128-aligned borders
    c1 = x_ref.shape[0]
    tc = w1_ref.shape[0]
    HW = H * W

    x = x_ref[...].astype(jnp.float32)                         # (c1, HW)
    w1 = w1_ref[...]
    b1 = b1_ref[...]

    # ---- cv1: folded 1x1 conv (+BN) + SiLU, lane-dense over H*W ------------
    if c1 >= MXU_MIN_C1:
        # MXU path: one matmul pass, f32 accumulation.
        y = jnp.dot(w1, x, preferred_element_type=jnp.float32) + b1
    else:
        # Tiny contraction: VPU broadcast-MACs, seeded from the bias.
        y = b1 + w1[:, 0:1] * x[0:1, :]
        for i in range(1, c1):
            y = y + w1[:, i:i + 1] * x[i:i + 1, :]
    y = y * jax.nn.sigmoid(y)                                   # SiLU
    o_ref[0] = y.astype(o_ref.dtype)                            # first half of cat

    # ---- cv2: folded depthwise 5x5 'same' conv (+BN) + SiLU ----------------
    # Place y in a 128-aligned scratch row; zero only the borders (interior is
    # fully overwritten every step -- do NOT guard on program_id: wrong under
    # megacore "parallel" sharding).
    rpad = pf_ref.shape[1] - (lpad + HW)
    pf_ref[:, 0:lpad] = jnp.zeros((tc, lpad), jnp.float32)
    pf_ref[:, lpad + HW:lpad + HW + rpad] = jnp.zeros((tc, rpad), jnp.float32)
    pf_ref[:, lpad:lpad + HW] = y

    # In-kernel column index (for per-dx validity masks of the flat layout).
    cols = jax.lax.broadcasted_iota(jnp.int32, (1, HW), 1) % W

    w2 = w2_ref[...]                                            # (tc, 25)
    acc = b2_ref[...]                                           # (tc, 1): seeds bias
    for dx in range(DW_K):
        # Sum over dy first, then apply the column mask once per dx.
        acc_dy = None
        for dy in range(DW_K):
            t = dy * DW_K + dx
            off = (dy - DW_PAD) * W + (dx - DW_PAD)
            term = w2[:, t:t + 1] * pf_ref[:, lpad + off:lpad + off + HW]
            acc_dy = term if acc_dy is None else acc_dy + term
        if dx == DW_PAD:
            acc = acc + acc_dy                                  # center col: no mask
        else:
            s = dx - DW_PAD
            cmask = ((cols + s >= 0) & (cols + s < W)).astype(jnp.float32)
            acc = acc + cmask * acc_dy
    z = acc * jax.nn.sigmoid(acc)                               # SiLU
    o_ref[1] = z.astype(o_ref.dtype)                            # second half of cat


def _pick_channel_tile(c_):
    """Largest multiple-of-8 tile dividing c_ (<=128); falls back to c_."""
    for t in (128, 64, 32, 16, 8):
        if c_ % t == 0:
            return t
    return c_


def ghost_conv(x, w1, bn1, w2, bn2):
    """GhostConv forward (inference-mode BatchNorm, default k=1, s=1, g=1).

    x  : (N, c1, H, W)
    w1 : (c_, c1, 1, 1)   cv1 conv weight
    bn1: (gamma, beta, mean, var), each (c_,)
    w2 : (c_, 1, 5, 5)    cv2 depthwise conv weight
    bn2: (gamma, beta, mean, var), each (c_,)
    returns (N, 2*c_, H, W)
    """
    N, c1, H, W = x.shape
    c_ = w1.shape[0]
    HW = H * W

    # Fold BatchNorm (inference) into conv weight + bias.
    def fold(w, bn):
        g, b, m, v = bn
        s = g / jnp.sqrt(v + BN_EPS)
        return w * s[:, None, None, None], b - m * s

    w1f, b1f = fold(w1.astype(jnp.float32), bn1)
    w2f, b2f = fold(w2.astype(jnp.float32), bn2)
    w1_2d = w1f.reshape(c_, c1)                        # 1x1 conv -> plain matrix
    w2_2d = w2f.reshape(c_, DW_K * DW_K)               # depthwise taps, dy*5+dx
    b1_2d = b1f.reshape(c_, 1).astype(jnp.float32)
    b2_2d = b2f.reshape(c_, 1).astype(jnp.float32)

    # Scratch row holding y with zeroed, 128-aligned borders on both sides.
    lpad = ((DW_PAD * W + DW_PAD + 127) // 128) * 128  # >= max |tap offset|
    padw = lpad + HW + lpad

    tc = _pick_channel_tile(c_)
    n_cblk = c_ // tc

    x_flat = x.reshape(N, c1, HW)

    # VMEM budget: double-buffered x / out blocks + scratch + f32 temporaries.
    elem = jnp.dtype(x.dtype).itemsize
    need = (2 * c1 * HW * elem
            + 2 * 2 * tc * HW * elem
            + tc * padw * 4
            + 8 * tc * HW * 4
            + 2 * tc * (c1 + 2 * DW_K * DW_K) * 4)
    vmem_limit = int(min(max(2 * need, 32 * 1024 * 1024), 64 * 1024 * 1024))

    kernel = functools.partial(_ghost_conv_kernel, H, W, lpad)
    out_stacked = pl.pallas_call(
        kernel,
        out_shape=jax.ShapeDtypeStruct((N, 2, c_, HW), x.dtype),
        grid=(N, n_cblk),
        in_specs=[
            pl.BlockSpec((tc, c1), lambda b, c: (c, 0)),             # w1 (folded)
            pl.BlockSpec((tc, 1), lambda b, c: (c, 0)),              # b1
            pl.BlockSpec((tc, DW_K * DW_K), lambda b, c: (c, 0)),    # w2 (folded)
            pl.BlockSpec((tc, 1), lambda b, c: (c, 0)),              # b2
            pl.BlockSpec((None, c1, HW), lambda b, c: (b, 0, 0)),    # x, one image
        ],
        out_specs=pl.BlockSpec((None, 2, tc, HW), lambda b, c: (b, 0, c, 0)),
        scratch_shapes=[pltpu.VMEM((tc, padw), jnp.float32)],
        compiler_params=pltpu.CompilerParams(
            dimension_semantics=("parallel", "parallel"),
            vmem_limit_bytes=vmem_limit),
    )(w1_2d, b1_2d, w2_2d, b2_2d, x_flat)

    # (N, 2, c_, HW) -> (N, 2*c_, H, W): contiguous reshape == cat([y, z], 1).
    return out_stacked.reshape(N, 2 * c_, H, W)


def ghost_conv_ref(x, w1, bn1, w2, bn2):
    """Pure-JAX reference matching the PyTorch forward (inference BN)."""
    def bn_apply(v, bn):
        g, b, m, var = bn
        s = (g / jnp.sqrt(var + BN_EPS))[None, :, None, None]
        return (v - m[None, :, None, None]) * s + b[None, :, None, None]

    hp = jax.lax.Precision.HIGHEST
    y = jax.lax.conv_general_dilated(
        x, w1, window_strides=(1, 1), padding=[(0, 0), (0, 0)],
        dimension_numbers=("NCHW", "OIHW", "NCHW"), precision=hp)
    y = bn_apply(y, bn1)
    y = y * jax.nn.sigmoid(y)

    c_ = w2.shape[0]
    z = jax.lax.conv_general_dilated(
        y, w2, window_strides=(1, 1), padding=[(DW_PAD, DW_PAD)] * 2,
        dimension_numbers=("NCHW", "OIHW", "NCHW"),
        feature_group_count=c_, precision=hp)
    z = bn_apply(z, bn2)
    z = z * jax.nn.sigmoid(z)
    return jnp.concatenate([y, z], axis=1)


if __name__ == "__main__":
    key = jax.random.PRNGKey(0)
    k = jax.random.split(key, 12)

    N, c1, c2, H, W = 2, 4, 8, 16, 16
    c_ = c2 // 2

    x = jax.random.normal(k[0], (N, c1, H, W), dtype=jnp.float32)

    # Conv2d default init: uniform(+/- 1/sqrt(fan_in)), bias=False.
    bw1 = 1.0 / (c1 * 1 * 1) ** 0.5
    w1 = jax.random.uniform(k[1], (c_, c1, 1, 1), jnp.float32, -bw1, bw1)
    bw2 = 1.0 / (1 * DW_K * DW_K) ** 0.5
    w2 = jax.random.uniform(k[2], (c_, 1, DW_K, DW_K), jnp.float32, -bw2, bw2)

    # Non-trivial inference-mode BatchNorm parameters.
    def bn_params(k1, k2, k3, k4):
        gamma = jax.random.uniform(k1, (c_,), jnp.float32, 0.5, 1.5)
        beta = 0.1 * jax.random.normal(k2, (c_,), jnp.float32)
        mean = 0.1 * jax.random.normal(k3, (c_,), jnp.float32)
        var = jax.random.uniform(k4, (c_,), jnp.float32, 0.5, 1.5)
        return gamma, beta, mean, var

    bn1 = bn_params(k[3], k[4], k[5], k[6])
    bn2 = bn_params(k[7], k[8], k[9], k[10])

    out = ghost_conv(x, w1, bn1, w2, bn2)
    out = jax.block_until_ready(out)

    ref = ghost_conv_ref(x, w1, bn1, w2, bn2)
    assert out.shape == (N, c2, H, W)
    max_diff = float(jnp.max(jnp.abs(out - ref)))
    assert jnp.allclose(out, ref, atol=1e-4, rtol=1e-4), (
        f"mismatch vs reference: max abs diff = {max_diff}")

    print("KERNEL_OK")
</pallas_src>

<mosaic_0001>
module attributes {stable_mosaic.version = 11 : i64} {
  func.func @_ghost_conv_kernel(%arg0: i32, %arg1: i32, %arg2: memref<4x4xf32, #tpu.memory_space<vmem>>, %arg3: memref<4x1xf32, #tpu.memory_space<vmem>>, %arg4: memref<4x25xf32, #tpu.memory_space<vmem>>, %arg5: memref<4x1xf32, #tpu.memory_space<vmem>>, %arg6: memref<1x4x256xf32, #tpu.memory_space<vmem>>, %arg7: memref<1x2x4x256xf32, #tpu.memory_space<vmem>>, %arg8: memref<4x512xf32, #tpu.memory_space<vmem>>) attributes {dimension_semantics = [#tpu.dimension_semantics<parallel>, #tpu.dimension_semantics<parallel>], iteration_bounds = array<i64: 2, 1>, scalar_prefetch = 0 : i64, scratch_operands = 1 : i64, tpu.core_type = #tpu.core_type<tc>, window_params = [{transform_indices = @transform_0, window_bounds = array<i64: 4, 4>}, {transform_indices = @transform_1, window_bounds = array<i64: 4, 1>}, {transform_indices = @transform_2, window_bounds = array<i64: 4, 25>}, {transform_indices = @transform_3, window_bounds = array<i64: 4, 1>}, {transform_indices = @transform_4, window_bounds = array<i64: 1, 4, 256>}, {transform_indices = @transform_5, window_bounds = array<i64: 1, 2, 4, 256>}]} {
    %c0 = arith.constant 0 : index
    %c0_0 = arith.constant 0 : index
    %c0_1 = arith.constant 0 : index
    %0 = vector.load %arg6[%c0, %c0_0, %c0_1] : memref<1x4x256xf32, #tpu.memory_space<vmem>>, vector<1x4x256xf32>
    %1 = vector.shape_cast %0 : vector<1x4x256xf32> to vector<4x256xf32>
    %c0_2 = arith.constant 0 : index
    %c0_3 = arith.constant 0 : index
    %2 = vector.load %arg2[%c0_2, %c0_3] : memref<4x4xf32, #tpu.memory_space<vmem>>, vector<4x4xf32>
    %c0_4 = arith.constant 0 : index
    %c0_5 = arith.constant 0 : index
    %3 = vector.load %arg3[%c0_4, %c0_5] : memref<4x1xf32, #tpu.memory_space<vmem>>, vector<4x1xf32>
    %4 = vector.extract_strided_slice %2 {offsets = [0, 0], sizes = [4, 1], strides = [1, 1]} : vector<4x4xf32> to vector<4x1xf32>
    %5 = vector.extract_strided_slice %1 {offsets = [0, 0], sizes = [1, 256], strides = [1, 1]} : vector<4x256xf32> to vector<1x256xf32>
    %6 = vector.broadcast %4 : vector<4x1xf32> to vector<4x256xf32>
    %7 = vector.broadcast %5 : vector<1x256xf32> to vector<4x256xf32>
    %8 = arith.mulf %6, %7 : vector<4x256xf32>
    %9 = vector.broadcast %3 : vector<4x1xf32> to vector<4x256xf32>
    %10 = arith.addf %9, %8 : vector<4x256xf32>
    %11 = vector.extract_strided_slice %2 {offsets = [0, 1], sizes = [4, 1], strides = [1, 1]} : vector<4x4xf32> to vector<4x1xf32>
    %12 = vector.extract_strided_slice %1 {offsets = [1, 0], sizes = [1, 256], strides = [1, 1]} : vector<4x256xf32> to vector<1x256xf32>
    %13 = vector.broadcast %11 : vector<4x1xf32> to vector<4x256xf32>
    %14 = vector.broadcast %12 : vector<1x256xf32> to vector<4x256xf32>
    %15 = arith.mulf %13, %14 : vector<4x256xf32>
    %16 = arith.addf %10, %15 : vector<4x256xf32>
    %17 = vector.extract_strided_slice %2 {offsets = [0, 2], sizes = [4, 1], strides = [1, 1]} : vector<4x4xf32> to vector<4x1xf32>
    %18 = vector.extract_strided_slice %1 {offsets = [2, 0], sizes = [1, 256], strides = [1, 1]} : vector<4x256xf32> to vector<1x256xf32>
    %19 = vector.broadcast %17 : vector<4x1xf32> to vector<4x256xf32>
    %20 = vector.broadcast %18 : vector<1x256xf32> to vector<4x256xf32>
    %21 = arith.mulf %19, %20 : vector<4x256xf32>
    %22 = arith.addf %16, %21 : vector<4x256xf32>
    %23 = vector.extract_strided_slice %2 {offsets = [0, 3], sizes = [4, 1], strides = [1, 1]} : vector<4x4xf32> to vector<4x1xf32>
    %24 = vector.extract_strided_slice %1 {offsets = [3, 0], sizes = [1, 256], strides = [1, 1]} : vector<4x256xf32> to vector<1x256xf32>
    %25 = vector.broadcast %23 : vector<4x1xf32> to vector<4x256xf32>
    %26 = vector.broadcast %24 : vector<1x256xf32> to vector<4x256xf32>
    %27 = arith.mulf %25, %26 : vector<4x256xf32>
    %28 = arith.addf %22, %27 : vector<4x256xf32>
    %29 = arith.negf %28 : vector<4x256xf32>
    %30 = math.exp %29 : vector<4x256xf32>
    %cst = arith.constant 1.000000e+00 : f32
    %31 = vector.broadcast %cst : f32 to vector<4x256xf32>
    %32 = arith.addf %31, %30 : vector<4x256xf32>
    %33 = arith.divf %31, %32 : vector<4x256xf32>
    %34 = arith.mulf %28, %33 : vector<4x256xf32>
    %c0_6 = arith.constant 0 : index
    %c0_7 = arith.constant 0 : index
    %c0_8 = arith.constant 0 : index
    %c0_9 = arith.constant 0 : index
    %35 = vector.load %arg7[%c0_6, %c0_7, %c0_8, %c0_9] : memref<1x2x4x256xf32, #tpu.memory_space<vmem>>, vector<1x1x4x256xf32>
    %36 = vector.shape_cast %35 : vector<1x1x4x256xf32> to vector<4x256xf32>
    %37 = vector.shape_cast %34 : vector<4x256xf32> to vector<1x1x4x256xf32>
    tpu.vector_store %arg7[%c0_6, %c0_7, %c0_8, %c0_9], %37 {strides = array<i32>} : memref<1x2x4x256xf32, #tpu.memory_space<vmem>>, vector<1x1x4x256xf32>,
    %cst_10 = arith.constant 0.000000e+00 : f32
    %38 = vector.broadcast %cst_10 : f32 to vector<4x128xf32>
    %c0_11 = arith.constant 0 : index
    %c0_12 = arith.constant 0 : index
    %39 = vector.load %arg8[%c0_11, %c0_12] : memref<4x512xf32, #tpu.memory_space<vmem>>, vector<4x128xf32>
    tpu.vector_store %arg8[%c0_11, %c0_12], %38 {strides = array<i32>} : memref<4x512xf32, #tpu.memory_space<vmem>>, vector<4x128xf32>,
    %cst_13 = arith.constant 0.000000e+00 : f32
    %40 = vector.broadcast %cst_13 : f32 to vector<4x128xf32>
    %c0_14 = arith.constant 0 : index
    %c384 = arith.constant 384 : index
    %41 = vector.load %arg8[%c0_14, %c384] : memref<4x512xf32, #tpu.memory_space<vmem>>, vector<4x128xf32>
    tpu.vector_store %arg8[%c0_14, %c384], %40 {strides = array<i32>} : memref<4x512xf32, #tpu.memory_space<vmem>>, vector<4x128xf32>,
    %c0_15 = arith.constant 0 : index
    %c128 = arith.constant 128 : index
    %42 = vector.load %arg8[%c0_15, %c128] : memref<4x512xf32, #tpu.memory_space<vmem>>, vector<4x256xf32>
    tpu.vector_store %arg8[%c0_15, %c128], %34 {strides = array<i32>} : memref<4x512xf32, #tpu.memory_space<vmem>>, vector<4x256xf32>,
    %43 = tpu.iota {dimensions = array<i32: 1>} : vector<1x256xi32>
    %c16_i32 = arith.constant 16 : i32
    %c0_i32 = arith.constant 0 : i32
    %44 = arith.cmpi eq, %c16_i32, %c0_i32 : i32
    %c1_i32 = arith.constant 1 : i32
    %45 = arith.select %44, %c1_i32, %c16_i32 : i32
    %46 = vector.broadcast %45 : i32 to vector<1x256xi32>
    %47 = arith.remsi %43, %46 : vector<1x256xi32>
    %c0_i32_16 = arith.constant 0 : i32
    %48 = vector.broadcast %c0_i32_16 : i32 to vector<1x256xi32>
    %49 = arith.cmpi ne, %47, %48 : vector<1x256xi32>
    %c0_i32_17 = arith.constant 0 : i32
    %50 = vector.broadcast %c0_i32_17 : i32 to vector<1x256xi32>
    %51 = arith.cmpi slt, %47, %50 : vector<1x256xi32>
    %c0_i32_18 = arith.constant 0 : i32
    %52 = arith.cmpi slt, %45, %c0_i32_18 : i32
    %53 = vector.broadcast %52 : i1 to vector<1x256xi1>
    %54 = vector.broadcast %53 : vector<1x256xi1> to vector<1x256xi1>
    %55 = arith.xori %51, %54 : vector<1x256xi1>
    %56 = arith.andi %55, %49 : vector<1x256xi1>
    %57 = vector.broadcast %45 : i32 to vector<1x256xi32>
    %58 = arith.addi %47, %57 : vector<1x256xi32>
    %59 = arith.select %56, %58, %47 : vector<1x256xi1>, vector<1x256xi32>
    %c0_19 = arith.constant 0 : index
    %c0_20 = arith.constant 0 : index
    %60 = vector.load %arg4[%c0_19, %c0_20] : memref<4x25xf32, #tpu.memory_space<vmem>>, vector<4x25xf32>
    %c0_21 = arith.constant 0 : index
    %c0_22 = arith.constant 0 : index
    %61 = vector.load %arg5[%c0_21, %c0_22] : memref<4x1xf32, #tpu.memory_space<vmem>>, vector<4x1xf32>
    %62 = vector.extract_strided_slice %60 {offsets = [0, 0], sizes = [4, 1], strides = [1, 1]} : vector<4x25xf32> to vector<4x1xf32>
    %c0_23 = arith.constant 0 : index
    %c94 = arith.constant 94 : index
    %63 = vector.load %arg8[%c0_23, %c94] : memref<4x512xf32, #tpu.memory_space<vmem>>, vector<4x256xf32>
    %64 = vector.broadcast %62 : vector<4x1xf32> to vector<4x256xf32>
    %65 = arith.mulf %64, %63 : vector<4x256xf32>
    %66 = vector.extract_strided_slice %60 {offsets = [0, 5], sizes = [4, 1], strides = [1, 1]} : vector<4x25xf32> to vector<4x1xf32>
    %c0_24 = arith.constant 0 : index
    %c110 = arith.constant 110 : index
    %67 = vector.load %arg8[%c0_24, %c110] : memref<4x512xf32, #tpu.memory_space<vmem>>, vector<4x256xf32>
    %68 = vector.broadcast %66 : vector<4x1xf32> to vector<4x256xf32>
    %69 = arith.mulf %68, %67 : vector<4x256xf32>
    %70 = arith.addf %65, %69 : vector<4x256xf32>
    %71 = vector.extract_strided_slice %60 {offsets = [0, 10], sizes = [4, 1], strides = [1, 1]} : vector<4x25xf32> to vector<4x1xf32>
    %c0_25 = arith.constant 0 : index
    %c126 = arith.constant 126 : index
    %72 = vector.load %arg8[%c0_25, %c126] : memref<4x512xf32, #tpu.memory_space<vmem>>, vector<4x256xf32>
    %73 = vector.broadcast %71 : vector<4x1xf32> to vector<4x256xf32>
    %74 = arith.mulf %73, %72 : vector<4x256xf32>
    %75 = arith.addf %70, %74 : vector<4x256xf32>
    %76 = vector.extract_strided_slice %60 {offsets = [0, 15], sizes = [4, 1], strides = [1, 1]} : vector<4x25xf32> to vector<4x1xf32>
    %c0_26 = arith.constant 0 : index
    %c142 = arith.constant 142 : index
    %77 = vector.load %arg8[%c0_26, %c142] : memref<4x512xf32, #tpu.memory_space<vmem>>, vector<4x256xf32>
    %78 = vector.broadcast %76 : vector<4x1xf32> to vector<4x256xf32>
    %79 = arith.mulf %78, %77 : vector<4x256xf32>
    %80 = arith.addf %75, %79 : vector<4x256xf32>
    %81 = vector.extract_strided_slice %60 {offsets = [0, 20], sizes = [4, 1], strides = [1, 1]} : vector<4x25xf32> to vector<4x1xf32>
    %c0_27 = arith.constant 0 : index
    %c158 = arith.constant 158 : index
    %82 = vector.load %arg8[%c0_27, %c158] : memref<4x512xf32, #tpu.memory_space<vmem>>, vector<4x256xf32>
    %83 = vector.broadcast %81 : vector<4x1xf32> to vector<4x256xf32>
    %84 = arith.mulf %83, %82 : vector<4x256xf32>
    %85 = arith.addf %80, %84 : vector<4x256xf32>
    %c-2_i32 = arith.constant -2 : i32
    %86 = vector.broadcast %c-2_i32 : i32 to vector<1x256xi32>
    %87 = arith.addi %59, %86 : vector<1x256xi32>
    %c0_i32_28 = arith.constant 0 : i32
    %88 = vector.broadcast %c0_i32_28 : i32 to vector<1x256xi32>
    %89 = arith.cmpi sge, %87, %88 : vector<1x256xi32>
    %c-2_i32_29 = arith.constant -2 : i32
    %90 = vector.broadcast %c-2_i32_29 : i32 to vector<1x256xi32>
    %91 = arith.addi %59, %90 : vector<1x256xi32>
    %c16_i32_30 = arith.constant 16 : i32
    %92 = vector.broadcast %c16_i32_30 : i32 to vector<1x256xi32>
    %93 = arith.cmpi slt, %91, %92 : vector<1x256xi32>
    %94 = arith.andi %89, %93 : vector<1x256xi1>
    %95 = arith.extui %94 : vector<1x256xi1> to vector<1x256xi32>
    %96 = arith.sitofp %95 : vector<1x256xi32> to vector<1x256xf32>
    %97 = vector.broadcast %96 : vector<1x256xf32> to vector<4x256xf32>
    %98 = arith.mulf %97, %85 : vector<4x256xf32>
    %99 = vector.broadcast %61 : vector<4x1xf32> to vector<4x256xf32>
    %100 = arith.addf %99, %98 : vector<4x256xf32>
    %101 = vector.extract_strided_slice %60 {offsets = [0, 1], sizes = [4, 1], strides = [1, 1]} : vector<4x25xf32> to vector<4x1xf32>
    %c0_31 = arith.constant 0 : index
    %c95 = arith.constant 95 : index
    %102 = vector.load %arg8[%c0_31, %c95] : memref<4x512xf32, #tpu.memory_space<vmem>>, vector<4x256xf32>
    %103 = vector.broadcast %101 : vector<4x1xf32> to vector<4x256xf32>
    %104 = arith.mulf %103, %102 : vector<4x256xf32>
    %105 = vector.extract_strided_slice %60 {offsets = [0, 6], sizes = [4, 1], strides = [1, 1]} : vector<4x25xf32> to vector<4x1xf32>
    %c0_32 = arith.constant 0 : index
    %c111 = arith.constant 111 : index
    %106 = vector.load %arg8[%c0_32, %c111] : memref<4x512xf32, #tpu.memory_space<vmem>>, vector<4x256xf32>
    %107 = vector.broadcast %105 : vector<4x1xf32> to vector<4x256xf32>
    %108 = arith.mulf %107, %106 : vector<4x256xf32>
    %109 = arith.addf %104, %108 : vector<4x256xf32>
    %110 = vector.extract_strided_slice %60 {offsets = [0, 11], sizes = [4, 1], strides = [1, 1]} : vector<4x25xf32> to vector<4x1xf32>
    %c0_33 = arith.constant 0 : index
    %c127 = arith.constant 127 : index
    %111 = vector.load %arg8[%c0_33, %c127] : memref<4x512xf32, #tpu.memory_space<vmem>>, vector<4x256xf32>
    %112 = vector.broadcast %110 : vector<4x1xf32> to vector<4x256xf32>
    %113 = arith.mulf %112, %111 : vector<4x256xf32>
    %114 = arith.addf %109, %113 : vector<4x256xf32>
    %115 = vector.extract_strided_slice %60 {offsets = [0, 16], sizes = [4, 1], strides = [1, 1]} : vector<4x25xf32> to vector<4x1xf32>
    %c0_34 = arith.constant 0 : index
    %c143 = arith.constant 143 : index
    %116 = vector.load %arg8[%c0_34, %c143] : memref<4x512xf32, #tpu.memory_space<vmem>>, vector<4x256xf32>
    %117 = vector.broadcast %115 : vector<4x1xf32> to vector<4x256xf32>
    %118 = arith.mulf %117, %116 : vector<4x256xf32>
    %119 = arith.addf %114, %118 : vector<4x256xf32>
    %120 = vector.extract_strided_slice %60 {offsets = [0, 21], sizes = [4, 1], strides = [1, 1]} : vector<4x25xf32> to vector<4x1xf32>
    %c0_35 = arith.constant 0 : index
    %c159 = arith.constant 159 : index
    %121 = vector.load %arg8[%c0_35, %c159] : memref<4x512xf32, #tpu.memory_space<vmem>>, vector<4x256xf32>
    %122 = vector.broadcast %120 : vector<4x1xf32> to vector<4x256xf32>
    %123 = arith.mulf %122, %121 : vector<4x256xf32>
    %124 = arith.addf %119, %123 : vector<4x256xf32>
    %c-1_i32 = arith.constant -1 : i32
    %125 = vector.broadcast %c-1_i32 : i32 to vector<1x256xi32>
    %126 = arith.addi %59, %125 : vector<1x256xi32>
    %c0_i32_36 = arith.constant 0 : i32
    %127 = vector.broadcast %c0_i32_36 : i32 to vector<1x256xi32>
    %128 = arith.cmpi sge, %126, %127 : vector<1x256xi32>
    %c-1_i32_37 = arith.constant -1 : i32
    %129 = vector.broadcast %c-1_i32_37 : i32 to vector<1x256xi32>
    %130 = arith.addi %59, %129 : vector<1x256xi32>
    %c16_i32_38 = arith.constant 16 : i32
    %131 = vector.broadcast %c16_i32_38 : i32 to vector<1x256xi32>
    %132 = arith.cmpi slt, %130, %131 : vector<1x256xi32>
    %133 = arith.andi %128, %132 : vector<1x256xi1>
    %134 = arith.extui %133 : vector<1x256xi1> to vector<1x256xi32>
    %135 = arith.sitofp %134 : vector<1x256xi32> to vector<1x256xf32>
    %136 = vector.broadcast %135 : vector<1x256xf32> to vector<4x256xf32>
    %137 = arith.mulf %136, %124 : vector<4x256xf32>
    %138 = arith.addf %100, %137 : vector<4x256xf32>
    %139 = vector.extract_strided_slice %60 {offsets = [0, 2], sizes = [4, 1], strides = [1, 1]} : vector<4x25xf32> to vector<4x1xf32>
    %c0_39 = arith.constant 0 : index
    %c96 = arith.constant 96 : index
    %140 = vector.load %arg8[%c0_39, %c96] : memref<4x512xf32, #tpu.memory_space<vmem>>, vector<4x256xf32>
    %141 = vector.broadcast %139 : vector<4x1xf32> to vector<4x256xf32>
    %142 = arith.mulf %141, %140 : vector<4x256xf32>
    %143 = vector.extract_strided_slice %60 {offsets = [0, 7], sizes = [4, 1], strides = [1, 1]} : vector<4x25xf32> to vector<4x1xf32>
    %c0_40 = arith.constant 0 : index
    %c112 = arith.constant 112 : index
    %144 = vector.load %arg8[%c0_40, %c112] : memref<4x512xf32, #tpu.memory_space<vmem>>, vector<4x256xf32>
    %145 = vector.broadcast %143 : vector<4x1xf32> to vector<4x256xf32>
    %146 = arith.mulf %145, %144 : vector<4x256xf32>
    %147 = arith.addf %142, %146 : vector<4x256xf32>
    %148 = vector.extract_strided_slice %60 {offsets = [0, 12], sizes = [4, 1], strides = [1, 1]} : vector<4x25xf32> to vector<4x1xf32>
    %c0_41 = arith.constant 0 : index
    %c128_42 = arith.constant 128 : index
    %149 = vector.load %arg8[%c0_41, %c128_42] : memref<4x512xf32, #tpu.memory_space<vmem>>, vector<4x256xf32>
    %150 = vector.broadcast %148 : vector<4x1xf32> to vector<4x256xf32>
    %151 = arith.mulf %150, %149 : vector<4x256xf32>
    %152 = arith.addf %147, %151 : vector<4x256xf32>
    %153 = vector.extract_strided_slice %60 {offsets = [0, 17], sizes = [4, 1], strides = [1, 1]} : vector<4x25xf32> to vector<4x1xf32>
    %c0_43 = arith.constant 0 : index
    %c144 = arith.constant 144 : index
    %154 = vector.load %arg8[%c0_43, %c144] : memref<4x512xf32, #tpu.memory_space<vmem>>, vector<4x256xf32>
    %155 = vector.broadcast %153 : vector<4x1xf32> to vector<4x256xf32>
    %156 = arith.mulf %155, %154 : vector<4x256xf32>
    %157 = arith.addf %152, %156 : vector<4x256xf32>
    %158 = vector.extract_strided_slice %60 {offsets = [0, 22], sizes = [4, 1], strides = [1, 1]} : vector<4x25xf32> to vector<4x1xf32>
    %c0_44 = arith.constant 0 : index
    %c160 = arith.constant 160 : index
    %159 = vector.load %arg8[%c0_44, %c160] : memref<4x512xf32, #tpu.memory_space<vmem>>, vector<4x256xf32>
    %160 = vector.broadcast %158 : vector<4x1xf32> to vector<4x256xf32>
    %161 = arith.mulf %160, %159 : vector<4x256xf32>
    %162 = arith.addf %157, %161 : vector<4x256xf32>
    %163 = arith.addf %138, %162 : vector<4x256xf32>
    %164 = vector.extract_strided_slice %60 {offsets = [0, 3], sizes = [4, 1], strides = [1, 1]} : vector<4x25xf32> to vector<4x1xf32>
    %c0_45 = arith.constant 0 : index
    %c97 = arith.constant 97 : index
    %165 = vector.load %arg8[%c0_45, %c97] : memref<4x512xf32, #tpu.memory_space<vmem>>, vector<4x256xf32>
    %166 = vector.broadcast %164 : vector<4x1xf32> to vector<4x256xf32>
    %167 = arith.mulf %166, %165 : vector<4x256xf32>
    %168 = vector.extract_strided_slice %60 {offsets = [0, 8], sizes = [4, 1], strides = [1, 1]} : vector<4x25xf32> to vector<4x1xf32>
    %c0_46 = arith.constant 0 : index
    %c113 = arith.constant 113 : index
    %169 = vector.load %arg8[%c0_46, %c113] : memref<4x512xf32, #tpu.memory_space<vmem>>, vector<4x256xf32>
    %170 = vector.broadcast %168 : vector<4x1xf32> to vector<4x256xf32>
    %171 = arith.mulf %170, %169 : vector<4x256xf32>
    %172 = arith.addf %167, %171 : vector<4x256xf32>
    %173 = vector.extract_strided_slice %60 {offsets = [0, 13], sizes = [4, 1], strides = [1, 1]} : vector<4x25xf32> to vector<4x1xf32>
    %c0_47 = arith.constant 0 : index
    %c129 = arith.constant 129 : index
    %174 = vector.load %arg8[%c0_47, %c129] : memref<4x512xf32, #tpu.memory_space<vmem>>, vector<4x256xf32>
    %175 = vector.broadcast %173 : vector<4x1xf32> to vector<4x256xf32>
    %176 = arith.mulf %175, %174 : vector<4x256xf32>
    %177 = arith.addf %172, %176 : vector<4x256xf32>
    %178 = vector.extract_strided_slice %60 {offsets = [0, 18], sizes = [4, 1], strides = [1, 1]} : vector<4x25xf32> to vector<4x1xf32>
    %c0_48 = arith.constant 0 : index
    %c145 = arith.constant 145 : index
    %179 = vector.load %arg8[%c0_48, %c145] : memref<4x512xf32, #tpu.memory_space<vmem>>, vector<4x256xf32>
    %180 = vector.broadcast %178 : vector<4x1xf32> to vector<4x256xf32>
    %181 = arith.mulf %180, %179 : vector<4x256xf32>
    %182 = arith.addf %177, %181 : vector<4x256xf32>
    %183 = vector.extract_strided_slice %60 {offsets = [0, 23], sizes = [4, 1], strides = [1, 1]} : vector<4x25xf32> to vector<4x1xf32>
    %c0_49 = arith.constant 0 : index
    %c161 = arith.constant 161 : index
    %184 = vector.load %arg8[%c0_49, %c161] : memref<4x512xf32, #tpu.memory_space<vmem>>, vector<4x256xf32>
    %185 = vector.broadcast %183 : vector<4x1xf32> to vector<4x256xf32>
    %186 = arith.mulf %185, %184 : vector<4x256xf32>
    %187 = arith.addf %182, %186 : vector<4x256xf32>
    %c1_i32_50 = arith.constant 1 : i32
    %188 = vector.broadcast %c1_i32_50 : i32 to vector<1x256xi32>
    %189 = arith.addi %59, %188 : vector<1x256xi32>
    %c0_i32_51 = arith.constant 0 : i32
    %190 = vector.broadcast %c0_i32_51 : i32 to vector<1x256xi32>
    %191 = arith.cmpi sge, %189, %190 : vector<1x256xi32>
    %c1_i32_52 = arith.constant 1 : i32
    %192 = vector.broadcast %c1_i32_52 : i32 to vector<1x256xi32>
    %193 = arith.addi %59, %192 : vector<1x256xi32>
    %c16_i32_53 = arith.constant 16 : i32
    %194 = vector.broadcast %c16_i32_53 : i32 to vector<1x256xi32>
    %195 = arith.cmpi slt, %193, %194 : vector<1x256xi32>
    %196 = arith.andi %191, %195 : vector<1x256xi1>
    %197 = arith.extui %196 : vector<1x256xi1> to vector<1x256xi32>
    %198 = arith.sitofp %197 : vector<1x256xi32> to vector<1x256xf32>
    %199 = vector.broadcast %198 : vector<1x256xf32> to vector<4x256xf32>
    %200 = arith.mulf %199, %187 : vector<4x256xf32>
    %201 = arith.addf %163, %200 : vector<4x256xf32>
    %202 = vector.extract_strided_slice %60 {offsets = [0, 4], sizes = [4, 1], strides = [1, 1]} : vector<4x25xf32> to vector<4x1xf32>
    %c0_54 = arith.constant 0 : index
    %c98 = arith.constant 98 : index
    %203 = vector.load %arg8[%c0_54, %c98] : memref<4x512xf32, #tpu.memory_space<vmem>>, vector<4x256xf32>
    %204 = vector.broadcast %202 : vector<4x1xf32> to vector<4x256xf32>
    %205 = arith.mulf %204, %203 : vector<4x256xf32>
    %206 = vector.extract_strided_slice %60 {offsets = [0, 9], sizes = [4, 1], strides = [1, 1]} : vector<4x25xf32> to vector<4x1xf32>
    %c0_55 = arith.constant 0 : index
    %c114 = arith.constant 114 : index
    %207 = vector.load %arg8[%c0_55, %c114] : memref<4x512xf32, #tpu.memory_space<vmem>>, vector<4x256xf32>
    %208 = vector.broadcast %206 : vector<4x1xf32> to vector<4x256xf32>
    %209 = arith.mulf %208, %207 : vector<4x256xf32>
    %210 = arith.addf %205, %209 : vector<4x256xf32>
    %211 = vector.extract_strided_slice %60 {offsets = [0, 14], sizes = [4, 1], strides = [1, 1]} : vector<4x25xf32> to vector<4x1xf32>
    %c0_56 = arith.constant 0 : index
    %c130 = arith.constant 130 : index
    %212 = vector.load %arg8[%c0_56, %c130] : memref<4x512xf32, #tpu.memory_space<vmem>>, vector<4x256xf32>
    %213 = vector.broadcast %211 : vector<4x1xf32> to vector<4x256xf32>
    %214 = arith.mulf %213, %212 : vector<4x256xf32>
    %215 = arith.addf %210, %214 : vector<4x256xf32>
    %216 = vector.extract_strided_slice %60 {offsets = [0, 19], sizes = [4, 1], strides = [1, 1]} : vector<4x25xf32> to vector<4x1xf32>
    %c0_57 = arith.constant 0 : index
    %c146 = arith.constant 146 : index
    %217 = vector.load %arg8[%c0_57, %c146] : memref<4x512xf32, #tpu.memory_space<vmem>>, vector<4x256xf32>
    %218 = vector.broadcast %216 : vector<4x1xf32> to vector<4x256xf32>
    %219 = arith.mulf %218, %217 : vector<4x256xf32>
    %220 = arith.addf %215, %219 : vector<4x256xf32>
    %221 = vector.extract_strided_slice %60 {offsets = [0, 24], sizes = [4, 1], strides = [1, 1]} : vector<4x25xf32> to vector<4x1xf32>
    %c0_58 = arith.constant 0 : index
    %c162 = arith.constant 162 : index
    %222 = vector.load %arg8[%c0_58, %c162] : memref<4x512xf32, #tpu.memory_space<vmem>>, vector<4x256xf32>
    %223 = vector.broadcast %221 : vector<4x1xf32> to vector<4x256xf32>
    %224 = arith.mulf %223, %222 : vector<4x256xf32>
    %225 = arith.addf %220, %224 : vector<4x256xf32>
    %c2_i32 = arith.constant 2 : i32
    %226 = vector.broadcast %c2_i32 : i32 to vector<1x256xi32>
    %227 = arith.addi %59, %226 : vector<1x256xi32>
    %c0_i32_59 = arith.constant 0 : i32
    %228 = vector.broadcast %c0_i32_59 : i32 to vector<1x256xi32>
    %229 = arith.cmpi sge, %227, %228 : vector<1x256xi32>
    %c2_i32_60 = arith.constant 2 : i32
    %230 = vector.broadcast %c2_i32_60 : i32 to vector<1x256xi32>
    %231 = arith.addi %59, %230 : vector<1x256xi32>
    %c16_i32_61 = arith.constant 16 : i32
    %232 = vector.broadcast %c16_i32_61 : i32 to vector<1x256xi32>
    %233 = arith.cmpi slt, %231, %232 : vector<1x256xi32>
    %234 = arith.andi %229, %233 : vector<1x256xi1>
    %235 = arith.extui %234 : vector<1x256xi1> to vector<1x256xi32>
    %236 = arith.sitofp %235 : vector<1x256xi32> to vector<1x256xf32>
    %237 = vector.broadcast %236 : vector<1x256xf32> to vector<4x256xf32>
    %238 = arith.mulf %237, %225 : vector<4x256xf32>
    %239 = arith.addf %201, %238 : vector<4x256xf32>
    %240 = arith.negf %239 : vector<4x256xf32>
    %241 = math.exp %240 : vector<4x256xf32>
    %cst_62 = arith.constant 1.000000e+00 : f32
    %242 = vector.broadcast %cst_62 : f32 to vector<4x256xf32>
    %243 = arith.addf %242, %241 : vector<4x256xf32>
    %244 = arith.divf %242, %243 : vector<4x256xf32>
    %245 = arith.mulf %239, %244 : vector<4x256xf32>
    %c0_63 = arith.constant 0 : index
    %c1 = arith.constant 1 : index
    %c0_64 = arith.constant 0 : index
    %c0_65 = arith.constant 0 : index
    %246 = vector.load %arg7[%c0_63, %c1, %c0_64, %c0_65] : memref<1x2x4x256xf32, #tpu.memory_space<vmem>>, vector<1x1x4x256xf32>
    %247 = vector.shape_cast %246 : vector<1x1x4x256xf32> to vector<4x256xf32>
    %248 = vector.shape_cast %245 : vector<4x256xf32> to vector<1x1x4x256xf32>
    tpu.vector_store %arg7[%c0_63, %c1, %c0_64, %c0_65], %248 {strides = array<i32>} : memref<1x2x4x256xf32, #tpu.memory_space<vmem>>, vector<1x1x4x256xf32>,
    return
  }
  func.func @transform_0(%arg0: i32, %arg1: i32) -> (i32, i32) {
    %c0_i32 = arith.constant 0 : i32
    %c0_i32_0 = arith.constant 0 : i32
    return %arg1, %c0_i32 : i32, i32
  }
  func.func @transform_1(%arg0: i32, %arg1: i32) -> (i32, i32) {
    %c0_i32 = arith.constant 0 : i32
    %c0_i32_0 = arith.constant 0 : i32
    return %arg1, %c0_i32 : i32, i32
  }
  func.func @transform_2(%arg0: i32, %arg1: i32) -> (i32, i32) {
    %c0_i32 = arith.constant 0 : i32
    %c0_i32_0 = arith.constant 0 : i32
    return %arg1, %c0_i32 : i32, i32
  }
  func.func @transform_3(%arg0: i32, %arg1: i32) -> (i32, i32) {
    %c0_i32 = arith.constant 0 : i32
    %c0_i32_0 = arith.constant 0 : i32
    return %arg1, %c0_i32 : i32, i32
  }
  func.func @transform_4(%arg0: i32, %arg1: i32) -> (i32, i32, i32) {
    %c0_i32 = arith.constant 0 : i32
    %c0_i32_0 = arith.constant 0 : i32
    %c0_i32_1 = arith.constant 0 : i32
    return %arg0, %c0_i32, %c0_i32_0 : i32, i32, i32
  }
  func.func @transform_5(%arg0: i32, %arg1: i32) -> (i32, i32, i32, i32) {
    %c0_i32 = arith.constant 0 : i32
    %c0_i32_0 = arith.constant 0 : i32
    %c0_i32_1 = arith.constant 0 : i32
    return %arg0, %c0_i32, %arg1, %c0_i32_0 : i32, i32, i32, i32
  }
}

</mosaic_0001>

<llo_original>
// kernel: tpu_custom_call.1
$region0: #{tpu_custom_call.1}
  #allocation0 [shape = 'u32[]', space=smem, size = 0x4, offset = 0x4, fixed_abs, tag = 'smem constant byte address 0x4 - core index']
  #allocation1 [shape = 'u32[72,128]{1,0:T(1,128)}', space=vmem, size = 0x9000, scoped, tag = 'internal scratch']
  #allocation2 [shape = 'f32[4,512]{1,0:T(4,128)}', space=vmem, size = 0x2000, scoped, tag = 'scratch operand']
  %s0 = inlined_call_operand.vmem [shape: f32[4,4], index: 0, kind: input, shape index: {}]
  %s1 = inlined_call_operand.vmem [shape: f32[4,1], index: 1, kind: input, shape index: {}]
  %s2 = inlined_call_operand.vmem [shape: f32[4,25], index: 2, kind: input, shape index: {}]
  %s3 = inlined_call_operand.vmem [shape: f32[4,1], index: 3, kind: input, shape index: {}]
  %s4 = inlined_call_operand.hbm [shape: f32[2,4,256], index: 4, kind: input, shape index: {}]
  %s5 = inlined_call_operand.hbm [shape: f32[2,2,4,256], index: 5, kind: output, shape index: {}]
  %s6 = sld [smem:[#allocation0]]
  $region57: #{tpu_custom_call.1} parent=0
    _
  %s8 = ssub.s32 1, %s6
  %s9 = scalar_select 0, %s8, %s6
  $region1: #{tpu_custom_call.1} parent=0
    #allocation3 [shape = 'u8[8192]{0}', space=vmem, size = 0x2000, scoped, tag = 'input window, operand 4']
    #allocation4 [shape = 's32[2]{0}', space=sflag, size = 0x8, scoped, tag = 'scoped memory for tpu_custom_call.1']
    #allocation5 [shape = 's32[2]{0}', space=sflag, size = 0x8, scoped, tag = 'scoped memory for tpu_custom_call.1']
    #allocation6 [shape = 'u8[16384]{0}', space=vmem, size = 0x4000, scoped, tag = 'output window, operand 0']
    %10 = vsyncpa [#allocation4], 0
    %s11 = scalar_lea.sflag [#allocation4], 1
    %12 = vsyncpa %s11, 0
    %13 = vsyncpa [#allocation5], 0
    %s14 = scalar_lea.sflag [#allocation5], 1
    %15 = vsyncpa %s14, 0
    loop: start=0, step=1, limit=4
    $region2: #{tpu_custom_call.1} parent=1 // loop_pre_header
      _
    $region3: #{tpu_custom_call.1} parent=1 // loop_header
      %s17 = sphi 0, %s21
      %p18 = scmp.ge.s32.totalorder %s17, 4
      %s24 = sphi 0, %s36
      %s25 = sphi 0, %s32
      %s26 = sphi 0, %s24
      %s27 = sphi 0, %s25
      %s28 = sphi 0, %s26
      %s29 = sphi 0, %s27
      %s39 = sphi 0, %s41
      %s42 = sphi 0, %s39
      %s43 = sphi 0, %s42
      %s59 = sphi 0, %s43
      %s65 = sphi 0, %s67
      %s68 = sphi 0, %s65
      %s69 = sphi 0, %s68
      %s85 = sphi 0, %s69
      %s91 = sphi 0, %s93
      %s94 = sphi 0, %s91
      %s95 = sphi 0, %s94
      %s111 = sphi 0, %s95
      %s117 = sphi 0, %s119
      %s120 = sphi 0, %s117
      %s121 = sphi 0, %s120
      %s137 = sphi 0, %s121
      %s143 = sphi 0, %s145
      %s146 = sphi 0, %s143
      %s147 = sphi 0, %s146
      %s163 = sphi 0, %s147
      %s171 = sphi 0, %s173
      %s174 = sphi 0, %s171
      %s175 = sphi 0, %s174
      %s191 = sphi 0, %s175
    $region4: #{tpu_custom_call.1} parent=1 // loop_header_branch
      %20 = sbr.rel (%p18) target = $region8
    $region5: #{tpu_custom_call.1} parent=1 // loop_body
      %s22 = ssub.s32 %s17, 1
      %s23 = ssub.s32 %s17, 2
      %s30 = sadd.s32 1, %s25
      %p31 = scmp.ge.s32.totalorder %s30, 1
      %s32 = scalar_select %p31, 0, %s30
      %s33 = sadd.s32 1, %s24
      %s34 = scalar_select %p31, %s33, %s24
      %p35 = scmp.ge.s32.totalorder %s34, 2
      %s36 = scalar_select %p35, 0, %s34
      %s37 = ssub.s32 %s25, %s32
      %p38 = scmp.eq.s32.totalorder %s37, 0
      %s40 = sadd.s32 %s39, 1
      %s41 = scalar_select %p38, %s39, %s40
      %p44 = pneg %p38
      %p45 = scmp.eq.s32.totalorder %s17, 1
      %p46 = por %p44, %p45
      %p47 = scmp.ne.s32.totalorder %s39, %s42
      %p48 = scmp.eq.s32.totalorder %s17, 0
      %p49 = por %p47, %p48
      %p50 = scmp.ne.s32.totalorder %s39, %s42
      %p51 = scmp.eq.s32.totalorder %s22, 1
      %p52 = por %p50, %p51
      %p53 = scmp.ne.s32.totalorder %s42, %s43
      %p54 = scmp.eq.s32.totalorder %s22, 0
      %p55 = por %p53, %p54
      %p56 = scmp.ne.s32.totalorder %s42, %s43
      %p57 = scmp.eq.s32.totalorder %s23, 1
      %p58 = por %p56, %p57
      %p60 = scmp.ne.s32.totalorder %s43, %s59
      %p61 = scmp.eq.s32.totalorder %s23, 0
      %p62 = por %p60, %p61
      %s63 = ssub.s32 %s25, %s32
      %p64 = scmp.eq.s32.totalorder %s63, 0
      %s66 = sadd.s32 %s65, 1
      %s67 = scalar_select %p64, %s65, %s66
      %p70 = pneg %p64
      %p71 = scmp.eq.s32.totalorder %s17, 1
      %p72 = por %p70, %p71
      %p73 = scmp.ne.s32.totalorder %s65, %s68
      %p74 = scmp.eq.s32.totalorder %s17, 0
      %p75 = por %p73, %p74
      %p76 = scmp.ne.s32.totalorder %s65, %s68
      %p77 = scmp.eq.s32.totalorder %s22, 1
      %p78 = por %p76, %p77
      %p79 = scmp.ne.s32.totalorder %s68, %s69
      %p80 = scmp.eq.s32.totalorder %s22, 0
      %p81 = por %p79, %p80
      %p82 = scmp.ne.s32.totalorder %s68, %s69
      %p83 = scmp.eq.s32.totalorder %s23, 1
      %p84 = por %p82, %p83
      %p86 = scmp.ne.s32.totalorder %s69, %s85
      %p87 = scmp.eq.s32.totalorder %s23, 0
      %p88 = por %p86, %p87
      %s89 = ssub.s32 %s25, %s32
      %p90 = scmp.eq.s32.totalorder %s89, 0
      %s92 = sadd.s32 %s91, 1
      %s93 = scalar_select %p90, %s91, %s92
      %p96 = pneg %p90
      %p97 = scmp.eq.s32.totalorder %s17, 1
      %p98 = por %p96, %p97
      %p99 = scmp.ne.s32.totalorder %s91, %s94
      %p100 = scmp.eq.s32.totalorder %s17, 0
      %p101 = por %p99, %p100
      %p102 = scmp.ne.s32.totalorder %s91, %s94
      %p103 = scmp.eq.s32.totalorder %s22, 1
      %p104 = por %p102, %p103
      %p105 = scmp.ne.s32.totalorder %s94, %s95
      %p106 = scmp.eq.s32.totalorder %s22, 0
      %p107 = por %p105, %p106
      %p108 = scmp.ne.s32.totalorder %s94, %s95
      %p109 = scmp.eq.s32.totalorder %s23, 1
      %p110 = por %p108, %p109
      %p112 = scmp.ne.s32.totalorder %s95, %s111
      %p113 = scmp.eq.s32.totalorder %s23, 0
      %p114 = por %p112, %p113
      %s115 = ssub.s32 %s25, %s32
      %p116 = scmp.eq.s32.totalorder %s115, 0
      %s118 = sadd.s32 %s117, 1
      %s119 = scalar_select %p116, %s117, %s118
      %p122 = pneg %p116
      %p123 = scmp.eq.s32.totalorder %s17, 1
      %p124 = por %p122, %p123
      %p125 = scmp.ne.s32.totalorder %s117, %s120
      %p126 = scmp.eq.s32.totalorder %s17, 0
      %p127 = por %p125, %p126
      %p128 = scmp.ne.s32.totalorder %s117, %s120
      %p129 = scmp.eq.s32.totalorder %s22, 1
      %p130 = por %p128, %p129
      %p131 = scmp.ne.s32.totalorder %s120, %s121
      %p132 = scmp.eq.s32.totalorder %s22, 0
      %p133 = por %p131, %p132
      %p134 = scmp.ne.s32.totalorder %s120, %s121
      %p135 = scmp.eq.s32.totalorder %s23, 1
      %p136 = por %p134, %p135
      %p138 = scmp.ne.s32.totalorder %s121, %s137
      %p139 = scmp.eq.s32.totalorder %s23, 0
      %p140 = por %p138, %p139
      %s141 = ssub.s32 %s24, %s36
      %p142 = scmp.eq.s32.totalorder %s141, 0
      %s144 = sadd.s32 %s143, 1
      %s145 = scalar_select %p142, %s143, %s144
      %p148 = pneg %p142
      %p149 = scmp.eq.s32.totalorder %s17, 1
      %p150 = por %p148, %p149
      %p151 = scmp.ne.s32.totalorder %s143, %s146
      %p152 = scmp.eq.s32.totalorder %s17, 0
      %p153 = por %p151, %p152
      %p154 = scmp.ne.s32.totalorder %s143, %s146
      %p155 = scmp.eq.s32.totalorder %s22, 1
      %p156 = por %p154, %p155
      %p157 = scmp.ne.s32.totalorder %s146, %s147
      %p158 = scmp.eq.s32.totalorder %s22, 0
      %p159 = por %p157, %p158
      %p160 = scmp.ne.s32.totalorder %s146, %s147
      %p161 = scmp.eq.s32.totalorder %s23, 1
      %p162 = por %p160, %p161
      %p164 = scmp.ne.s32.totalorder %s147, %s163
      %p165 = scmp.eq.s32.totalorder %s23, 0
      %p166 = por %p164, %p165
      %s167 = ssub.s32 %s24, %s36
      %s168 = ssub.s32 %s25, %s32
      %s169 = sor.u32 %s167, %s168
      %p170 = scmp.eq.s32.totalorder %s169, 0
      %s172 = sadd.s32 %s171, 1
      %s173 = scalar_select %p170, %s171, %s172
      %p176 = pneg %p170
      %p177 = scmp.eq.s32.totalorder %s17, 1
      %p178 = por %p176, %p177
      %p179 = scmp.ne.s32.totalorder %s171, %s174
      %p180 = scmp.eq.s32.totalorder %s17, 0
      %p181 = por %p179, %p180
      %p182 = scmp.ne.s32.totalorder %s171, %s174
      %p183 = scmp.eq.s32.totalorder %s22, 1
      %p184 = por %p182, %p183
      %p185 = scmp.ne.s32.totalorder %s174, %s175
      %p186 = scmp.eq.s32.totalorder %s22, 0
      %p187 = por %p185, %p186
      %p188 = scmp.ne.s32.totalorder %s174, %s175
      %p189 = scmp.eq.s32.totalorder %s23, 1
      %p190 = por %p188, %p189
      %p192 = scmp.ne.s32.totalorder %s175, %s191
      %p193 = scmp.eq.s32.totalorder %s23, 0
      %p194 = por %p192, %p193
      %p195 = scmp.le.s32.totalorder 1, %s17
      %p196 = scmp.lt.s32.totalorder %s17, 3
      %p197 = pnand %p195, %p196
      %p198 = pneg %p197
      // Predicated region
      $region9: #{tpu_custom_call.1} parent=5 // pred_check
        _
      $region10: #{tpu_custom_call.1} parent=5 // pred_check_branch
        %200 = sbr.rel (%p197) target = $region12
      $region11: #{tpu_custom_call.1} parent=5 // pred_region
        %s201 = ssub.s32 %s17, 1
        // Predicated region
        $region13: #{tpu_custom_call.1} parent=11 // pred_check
          %p202 = pneg %p55
        $region14: #{tpu_custom_call.1} parent=11 // pred_check_branch
          %204 = sbr.rel (%p202) target = $region16
        $region15: #{tpu_custom_call.1} parent=11 // pred_region
          %p205 = scmp.lt.s32.totalorder %s27, 0
          %s206 = scalar_select %p205, %s27, 0
          %s207 = smul.addr %s206, 4
          %s208 = scalar_lea.vmem %s0, %s207
        $region16: #{tpu_custom_call.1} parent=11 // pred_fallthru
          _
        // Predicated region
        $region17: #{tpu_custom_call.1} parent=11 // pred_check
          %p209 = pneg %p81
        $region18: #{tpu_custom_call.1} parent=11 // pred_check_branch
          %211 = sbr.rel (%p209) target = $region20
        $region19: #{tpu_custom_call.1} parent=11 // pred_region
          %p212 = scmp.lt.s32.totalorder %s27, 0
          %s213 = scalar_select %p212, %s27, 0
          %s214 = smul.addr %s213, 4
          %s215 = scalar_lea.vmem %s1, %s214
        $region20: #{tpu_custom_call.1} parent=11 // pred_fallthru
          _
        // Predicated region
        $region21: #{tpu_custom_call.1} parent=11 // pred_check
          %p216 = pneg %p107
        $region22: #{tpu_custom_call.1} parent=11 // pred_check_branch
          %218 = sbr.rel (%p216) target = $region24
        $region23: #{tpu_custom_call.1} parent=11 // pred_region
          %p219 = scmp.lt.s32.totalorder %s27, 0
          %s220 = scalar_select %p219, %s27, 0
          %s221 = smul.addr %s220, 4
          %s222 = scalar_lea.vmem %s2, %s221
        $region24: #{tpu_custom_call.1} parent=11 // pred_fallthru
          _
        // Predicated region
        $region25: #{tpu_custom_call.1} parent=11 // pred_check
          %p223 = pneg %p133
        $region26: #{tpu_custom_call.1} parent=11 // pred_check_branch
          %225 = sbr.rel (%p223) target = $region28
        $region27: #{tpu_custom_call.1} parent=11 // pred_region
          %p226 = scmp.lt.s32.totalorder %s27, 0
          %s227 = scalar_select %p226, %s27, 0
          %s228 = smul.addr %s227, 4
          %s229 = scalar_lea.vmem %s3, %s228
        $region28: #{tpu_custom_call.1} parent=11 // pred_fallthru
          _
      $region12: #{tpu_custom_call.1} parent=5 // pred_fallthru
        _
      %p230 = scmp.lt.s32.totalorder %s17, 2
      // Predicated region
      $region29: #{tpu_custom_call.1} parent=5 // pred_check
        %p231 = pneg %p230
      $region30: #{tpu_custom_call.1} parent=5 // pred_check_branch
        %233 = sbr.rel (%p231) target = $region32
      $region31: #{tpu_custom_call.1} parent=5 // pred_region
        // Predicated region
        $region33: #{tpu_custom_call.1} parent=31 // pred_check
          %p234 = pneg %p153
        $region34: #{tpu_custom_call.1} parent=31 // pred_check_branch
          %236 = sbr.rel (%p234) target = $region36
        $region35: #{tpu_custom_call.1} parent=31 // pred_region
          %s237 = sand.u32 %s143, 1
          %s238 = scalar_lea.sflag [#allocation4], %s237
          %s239 = sand.u32 %s143, 1
          %s240 = smul.addr %s239, 8
          %s241 = scalar_lea.vmem [#allocation3], %s240
          %243 = vsyncadd %s238, 0
          %s244 = smul.addr %s24, 2
          %s245 = smul.addr %s244, 4
          %s246 = scalar_lea.hbm %s4, %s245
          %s248 = sshll.u32 %s246, 4
          %s249 = int_to_ptr.hbm [resolvable:$true] %s248
          %s250 = sshll.u32 %s241, 4
          %s251 = int_to_ptr.vmem [resolvable:$true] %s250
          %253 = dma.hbm_to_vmem [thread:$0]  %s249, 128, %s251, %s238
        $region36: #{tpu_custom_call.1} parent=31 // pred_fallthru
          _
      $region32: #{tpu_custom_call.1} parent=5 // pred_fallthru
        _
      %p254 = scmp.le.s32.totalorder 1, %s17
      %p255 = scmp.lt.s32.totalorder %s17, 3
      %p256 = pnand %p254, %p255
      %p257 = pneg %p256
      // Predicated region
      $region37: #{tpu_custom_call.1} parent=5 // pred_check
        _
      $region38: #{tpu_custom_call.1} parent=5 // pred_check_branch
        %259 = sbr.rel (%p256) target = $region40
      $region39: #{tpu_custom_call.1} parent=5 // pred_region
        %s260 = ssub.s32 %s17, 1
        %s261 = sand.u32 %s146, 1
        %s262 = scalar_lea.sflag [#allocation4], %s261
        %s263 = sand.u32 %s146, 1
        %s264 = smul.addr %s263, 8
        %s265 = scalar_lea.vmem [#allocation3], %s264
        // Predicated region
        $region41: #{tpu_custom_call.1} parent=39 // pred_check
          %p266 = pneg %p159
        $region42: #{tpu_custom_call.1} parent=39 // pred_check_branch
          %268 = sbr.rel (%p266) target = $region44
        $region43: #{tpu_custom_call.1} parent=39 // pred_region
          %270 = dma.done %s262, 128
        $region44: #{tpu_custom_call.1} parent=39 // pred_fallthru
          _
        %p271 = scmp.lt.s32.totalorder %s27, 0
        %s272 = scalar_select %p271, %s27, 0
        %s273 = smul.addr %s272, 4
        %s274 = scalar_lea.vmem %s0, %s273
        %p275 = pneg %p55
        %p276 = pneg %p52
        %p277 = scmp.lt.s32.totalorder %s27, 0
        %s278 = scalar_select %p277, %s27, 0
        %s279 = smul.addr %s278, 4
        %s280 = scalar_lea.vmem %s1, %s279
        %p281 = pneg %p81
        %p282 = pneg %p78
        %p283 = scmp.lt.s32.totalorder %s27, 0
        %s284 = scalar_select %p283, %s27, 0
        %s285 = smul.addr %s284, 4
        %s286 = scalar_lea.vmem %s2, %s285
        %p287 = pneg %p107
        %p288 = pneg %p104
        %p289 = scmp.lt.s32.totalorder %s27, 0
        %s290 = scalar_select %p289, %s27, 0
        %s291 = smul.addr %s290, 4
        %s292 = scalar_lea.vmem %s3, %s291
        %p293 = pneg %p133
        %p294 = pneg %p130
        %s295 = sand.u32 %s146, 1
        %s296 = scalar_lea.sflag [#allocation4], %s295
        %s297 = sand.u32 %s146, 1
        %s298 = smul.addr %s297, 8
        %s299 = scalar_lea.vmem [#allocation3], %s298
        %p300 = pneg %p159
        %p301 = pneg %p156
        %p302 = pneg %p187
        %p303 = pneg %p184
        %s304 = sand.u32 %s174, 1
        %s305 = scalar_lea.sflag [#allocation5], %s304
        %s306 = sand.u32 %s174, 1
        %s307 = smul.addr %s306, 16
        %s308 = scalar_lea.vmem [#allocation6], %s307
        %p309 = scmp.lt.s32.totalorder %s27, 0
        %s310 = scalar_select %p309, %s27, 0
        %s311 = smul.addr %s310, 4
        %s312 = scalar_lea.vmem %s0, %s311
        %p313 = scmp.lt.s32.totalorder %s27, 0
        %s314 = scalar_select %p313, %s27, 0
        %s315 = smul.addr %s314, 4
        %s316 = scalar_lea.vmem %s1, %s315
        %p317 = scmp.lt.s32.totalorder %s27, 0
        %s318 = scalar_select %p317, %s27, 0
        %s319 = smul.addr %s318, 4
        %s320 = scalar_lea.vmem %s2, %s319
        %p321 = scmp.lt.s32.totalorder %s27, 0
        %s322 = scalar_select %p321, %s27, 0
        %s323 = smul.addr %s322, 4
        %s324 = scalar_lea.vmem %s3, %s323
        %v325 = vld [vmem:[%s265] sm:$0xff]
        %v326 = vld [vmem:[%s312] sm:$0xf]
        %v327 = vld [vmem:[%s316] sm:$0xf]
        %329 = vset.pattern.permute.xlu0 0
        %330 = vperm.xlu0 %329, %v326
        %v331 = vpop.permute.xlu0 %330
        %v334 = vperm.slane %v325, 0
        %v335 = vperm.slane %v325, 4
        %v338 = vperm.slane %v334, 0
        %v339 = vperm.slane %v335, 0
        %v340 = vmul.f32 %v331, %v338
        %v341 = vmul.f32 %v331, %v339
        %343 = vset.pattern.permute.xlu0 0
        %344 = vperm.xlu0 %343, %v327
        %v345 = vpop.permute.xlu0 %344
        %v347 = vadd.f32 %v345, %v340
        %v348 = vadd.f32 %v345, %v341
        %349 = vset.pattern.permute.xlu0 1
        %350 = vperm.xlu0 %349, %v326
        %v351 = vpop.permute.xlu0 %350
        %v353 = vperm.slane %v325, 1
        %v354 = vperm.slane %v325, 5
        %v357 = vperm.slane %v353, 1
        %v358 = vperm.slane %v354, 1
        %v359 = vmul.f32 %v351, %v357
        %v360 = vmul.f32 %v351, %v358
        %v361 = vadd.f32 %v347, %v359
        %v362 = vadd.f32 %v348, %v360
        %363 = vset.pattern.permute.xlu0 2
        %364 = vperm.xlu0 %363, %v326
        %v365 = vpop.permute.xlu0 %364
        %v367 = vperm.slane %v325, 2
        %v368 = vperm.slane %v325, 6
        %v371 = vperm.slane %v367, 2
        %v372 = vperm.slane %v368, 2
        %v373 = vmul.f32 %v365, %v371
        %v374 = vmul.f32 %v365, %v372
        %v375 = vadd.f32 %v361, %v373
        %v376 = vadd.f32 %v362, %v374
        %377 = vset.pattern.permute.xlu0 3
        %378 = vperm.xlu0 %377, %v326
        %v379 = vpop.permute.xlu0 %378
        %v381 = vperm.slane %v325, 3
        %v382 = vperm.slane %v325, 7
        %v385 = vperm.slane %v381, 3
        %v386 = vperm.slane %v382, 3
        %v387 = vmul.f32 %v379, %v385
        %v388 = vmul.f32 %v379, %v386
        %v389 = vadd.f32 %v375, %v387
        %v390 = vadd.f32 %v376, %v388
        %v391 = vxor.u32 %v389, 2147483648
        %v392 = vxor.u32 %v390, 2147483648
        %v393 = vmul.f32 %v391, 1.442695
        %v394 = vpow.pop %v393
        %v395 = vmul.f32 %v392, 1.442695
        %v396 = vpow.pop %v395
        %v397 = vadd.f32 %v394, 1.0
        %v398 = vadd.f32 %v396, 1.0
        %v399 = vrcp.pop %v397
        %v400 = vmul.f32 %v397, %v399
        %v401 = vsub.f32 1.0, %v400
        %v402 = vmul.f32 %v399, %v401
        %v403 = vadd.f32 %v399, %v402
        %vm404 = vweird.f32 %v397
        %vm405 = vweird.f32 %v399
        %vm406 = vmor %vm404, %vm405
        %v407 = vsel %vm406, %v399, %v403
        %v408 = vand.u32 2147483647, %v397
        %vm409 = vcmp.eq.f32.partialorder %v408, 8.507059e+37
        %v410 = vand.u32 %v397, 2147483648
        %v411 = vor.u32 1.1754944e-38, %v410
        %v412 = vsel %vm409, %v411, %v407
        %v413 = vmul.f32 1.0, %v412
        %v414 = vrcp.pop %v398
        %v415 = vmul.f32 %v398, %v414
        %v416 = vsub.f32 1.0, %v415
        %v417 = vmul.f32 %v414, %v416
        %v418 = vadd.f32 %v414, %v417
        %vm419 = vweird.f32 %v398
        %vm420 = vweird.f32 %v414
        %vm421 = vmor %vm419, %vm420
        %v422 = vsel %vm421, %v414, %v418
        %v423 = vand.u32 2147483647, %v398
        %vm424 = vcmp.eq.f32.partialorder %v423, 8.507059e+37
        %v425 = vand.u32 %v398, 2147483648
        %v426 = vor.u32 1.1754944e-38, %v425
        %v427 = vsel %vm424, %v426, %v422
        %v428 = vmul.f32 1.0, %v427
        %v429 = vmul.f32 %v389, %v413
        %v430 = vmul.f32 %v390, %v428
        %v433 = vrot.slane %v430, 4
        %vm434 = vcmask 1043456
        %v435 = vsel %vm434, %v429, %v433
        %437 = vst [vmem:[%s308] sm:$0xff] %v435
        %438 = vst [vmem:[#allocation2] sm:$0xf] 0.0
        %439 = vst [vmem:[#allocation2 + $0xc] sm:$0xf] 0.0
        %440 = vst [vmem:[#allocation2 + $0x4] sm:$0xff] %v435
        %v441 = vlaneseq
        %v442 = vand.u32 %v441, 127
        %v443 = vadd.s32 %v442, 128
        %vm444 = vcmp.lt.s32.totalorder %v442, 0
        %v445 = vsub.s32 0, %v442
        %v446 = vsel %vm444, %v445, %v442
        %v447 = vshrl.u32 %v446, 4
        %v448 = vand.u32 %v446, 15
        %v449 = vsub.s32 0, %v448
        %v450 = vsel %vm444, %v449, %v448
        %vm451 = vcmp.lt.s32.totalorder %v443, 0
        %v452 = vsub.s32 0, %v443
        %v453 = vsel %vm451, %v452, %v443
        %v454 = vshrl.u32 %v453, 4
        %v455 = vand.u32 %v453, 15
        %v456 = vsub.s32 0, %v455
        %v457 = vsel %vm451, %v456, %v455
        %vm458 = vcmp.ne.s32.totalorder %v450, 0
        %vm459 = vcmp.ne.s32.totalorder %v457, 0
        %vm460 = vcmp.lt.s32.totalorder %v450, 0
        %vm461 = vcmp.lt.s32.totalorder %v457, 0
        %vm462 = vmand %vm460, %vm458
        %vm463 = vmand %vm461, %vm459
        %v464 = vadd.s32 %v450, 16
        %v465 = vadd.s32 %v457, 16
        %v466 = vsel %vm462, %v464, %v450
        %v467 = vsel %vm463, %v465, %v457
        %v468 = vld [vmem:[%s320] sm:$0xf]
        %v469 = vld [vmem:[%s324] sm:$0xf]
        %v470 = vld [vmem:[#allocation2] sm:$0xff]
        %v471 = vld [vmem:[#allocation2 + $0x8] sm:$0xf]
        %473 = vset.pattern.permute.xlu0 0
        %474 = vperm.xlu0 %473, %v468
        %v475 = vpop.permute.xlu0 %474
        %479 = vst [vmem:[#allocation1] ss:$2 sm:$0xff] %v470
        %s480 = scalar_lea.vmem [#allocation1], 16
        %481 = vst [vmem:[%s480] ss:$2 sm:$0xff] %v471
        %v482 = vld.sshfl [vmem:[#allocation1] sm:$0xff pattern:$0x75316420]
        %v483 = vld.sshfl [vmem:[#allocation1 + $0x8] sm:$0xff pattern:$0x75316420]
        %v484 = vld.sshfl [vmem:[#allocation1 + $0x10] sm:$0xff pattern:$0x75316420]
        %485 = vrot.lane.b32.xlu0 %v482, 34
        %v486 = vpop.permute.xlu0 %485
        %487 = vrot.lane.b32.xlu0 %v483, 34
        %v488 = vpop.permute.xlu0 %487
        %489 = vrot.lane.b32.xlu0 %v484, 34
        %v490 = vpop.permute.xlu0 %489
        %vm491 = vcmask 277504
        %v492 = vsel %vm491, %v486, %v488
        %v493 = vsel %vm491, %v488, %v490
        %v496 = vmul.f32 %v475, %v492
        %v497 = vmul.f32 %v475, %v493
        %v498 = vld [vmem:[#allocation2] sm:$0xff]
        %v499 = vld [vmem:[#allocation2 + $0x8] sm:$0xf]
        %500 = vset.pattern.permute.xlu0 5
        %501 = vperm.xlu0 %500, %v468
        %v502 = vpop.permute.xlu0 %501
        %506 = vst [vmem:[#allocation1] ss:$2 sm:$0xff] %v498
        %s507 = scalar_lea.vmem [#allocation1], 16
        %508 = vst [vmem:[%s507] ss:$2 sm:$0xff] %v499
        %v509 = vld.sshfl [vmem:[#allocation1] sm:$0xff pattern:$0x75316420]
        %v510 = vld.sshfl [vmem:[#allocation1 + $0x8] sm:$0xff pattern:$0x75316420]
        %v511 = vld.sshfl [vmem:[#allocation1 + $0x10] sm:$0xff pattern:$0x75316420]
        %512 = vrot.lane.b32.xlu0 %v509, 18
        %v513 = vpop.permute.xlu0 %512
        %514 = vrot.lane.b32.xlu0 %v510, 18
        %v515 = vpop.permute.xlu0 %514
        %516 = vrot.lane.b32.xlu0 %v511, 18
        %v517 = vpop.permute.xlu0 %516
        %vm518 = vcmask 146432
        %v519 = vsel %vm518, %v513, %v515
        %v520 = vsel %vm518, %v515, %v517
        %v523 = vmul.f32 %v502, %v519
        %v524 = vmul.f32 %v502, %v520
        %v525 = vadd.f32 %v496, %v523
        %v526 = vadd.f32 %v497, %v524
        %v527 = vld [vmem:[#allocation2] sm:$0xff]
        %v528 = vld [vmem:[#allocation2 + $0x8] sm:$0xf]
        %529 = vset.pattern.permute.xlu0 10
        %530 = vperm.xlu0 %529, %v468
        %v531 = vpop.permute.xlu0 %530
        %535 = vst [vmem:[#allocation1] ss:$2 sm:$0xff] %v527
        %s536 = scalar_lea.vmem [#allocation1], 16
        %537 = vst [vmem:[%s536] ss:$2 sm:$0xff] %v528
        %v538 = vld.sshfl [vmem:[#allocation1] sm:$0xff pattern:$0x75316420]
        %v539 = vld.sshfl [vmem:[#allocation1 + $0x8] sm:$0xff pattern:$0x75316420]
        %v540 = vld.sshfl [vmem:[#allocation1 + $0x10] sm:$0xff pattern:$0x75316420]
        %541 = vrot.lane.b32.xlu0 %v538, 2
        %v542 = vpop.permute.xlu0 %541
        %543 = vrot.lane.b32.xlu0 %v539, 2
        %v544 = vpop.permute.xlu0 %543
        %545 = vrot.lane.b32.xlu0 %v540, 2
        %v546 = vpop.permute.xlu0 %545
        %vm547 = vcmask 15360
        %v548 = vsel %vm547, %v542, %v544
        %v549 = vsel %vm547, %v544, %v546
        %v552 = vmul.f32 %v531, %v548
        %v553 = vmul.f32 %v531, %v549
        %v554 = vadd.f32 %v525, %v552
        %v555 = vadd.f32 %v526, %v553
        %v556 = vld [vmem:[#allocation2 + $0x4] sm:$0xff]
        %v557 = vld [vmem:[#allocation2 + $0xc] sm:$0xf]
        %558 = vset.pattern.permute.xlu0 15
        %559 = vperm.xlu0 %558, %v468
        %v560 = vpop.permute.xlu0 %559
        %564 = vst [vmem:[#allocation1] ss:$2 sm:$0xff] %v556
        %s565 = scalar_lea.vmem [#allocation1], 16
        %566 = vst [vmem:[%s565] ss:$2 sm:$0xff] %v557
        %v567 = vld.sshfl [vmem:[#allocation1] sm:$0xff pattern:$0x75316420]
        %v568 = vld.sshfl [vmem:[#allocation1 + $0x8] sm:$0xff pattern:$0x75316420]
        %v569 = vld.sshfl [vmem:[#allocation1 + $0x10] sm:$0xff pattern:$0x75316420]
        %570 = vrot.lane.b32.xlu0 %v567, 114
        %v571 = vpop.permute.xlu0 %570
        %572 = vrot.lane.b32.xlu0 %v568, 114
        %v573 = vpop.permute.xlu0 %572
        %574 = vrot.lane.b32.xlu0 %v569, 114
        %v575 = vpop.permute.xlu0 %574
        %vm576 = vcmask 932864
        %v577 = vsel %vm576, %v571, %v573
        %v578 = vsel %vm576, %v573, %v575
        %v581 = vmul.f32 %v560, %v577
        %v582 = vmul.f32 %v560, %v578
        %v583 = vadd.f32 %v554, %v581
        %v584 = vadd.f32 %v555, %v582
        %v585 = vld [vmem:[#allocation2 + $0x4] sm:$0xff]
        %v586 = vld [vmem:[#allocation2 + $0xc] sm:$0xf]
        %587 = vset.pattern.permute.xlu0 20
        %588 = vperm.xlu0 %587, %v468
        %v589 = vpop.permute.xlu0 %588
        %593 = vst [vmem:[#allocation1] ss:$2 sm:$0xff] %v585
        %s594 = scalar_lea.vmem [#allocation1], 16
        %595 = vst [vmem:[%s594] ss:$2 sm:$0xff] %v586
        %v596 = vld.sshfl [vmem:[#allocation1] sm:$0xff pattern:$0x75316420]
        %v597 = vld.sshfl [vmem:[#allocation1 + $0x8] sm:$0xff pattern:$0x75316420]
        %v598 = vld.sshfl [vmem:[#allocation1 + $0x10] sm:$0xff pattern:$0x75316420]
        %599 = vrot.lane.b32.xlu0 %v596, 98
        %v600 = vpop.permute.xlu0 %599
        %601 = vrot.lane.b32.xlu0 %v597, 98
        %v602 = vpop.permute.xlu0 %601
        %603 = vrot.lane.b32.xlu0 %v598, 98
        %v604 = vpop.permute.xlu0 %603
        %vm605 = vcmask 801792
        %v606 = vsel %vm605, %v600, %v602
        %v607 = vsel %vm605, %v602, %v604
        %v610 = vmul.f32 %v589, %v606
        %v611 = vmul.f32 %v589, %v607
        %v612 = vadd.f32 %v583, %v610
        %v613 = vadd.f32 %v584, %v611
        %v614 = vadd.s32 %v466, 4294967294
        %v615 = vadd.s32 %v467, 4294967294
        %vm616 = vcmp.ge.s32.totalorder %v614, 0
        %vm617 = vcmp.ge.s32.totalorder %v615, 0
        %vm618 = vcmp.lt.s32.totalorder %v614, 16
        %vm619 = vcmp.lt.s32.totalorder %v615, 16
        %vm620 = vmand %vm616, %vm618
        %vm621 = vmand %vm617, %vm619
        %v622 = vsel %vm620, 1, 0
        %v623 = vsel %vm621, 1, 0
        %v624 = vcvt.s32.f32 %v622
        %v625 = vcvt.s32.f32 %v623
        %v626 = vmul.f32 %v624, %v612
        %v627 = vmul.f32 %v625, %v613
        %629 = vset.pattern.permute.xlu0 0
        %630 = vperm.xlu0 %629, %v469
        %v631 = vpop.permute.xlu0 %630
        %v633 = vadd.f32 %v631, %v626
        %v634 = vadd.f32 %v631, %v627
        %v635 = vld [vmem:[#allocation2] sm:$0xff]
        %v636 = vld [vmem:[#allocation2 + $0x8] sm:$0xf]
        %637 = vset.pattern.permute.xlu0 1
        %638 = vperm.xlu0 %637, %v468
        %v639 = vpop.permute.xlu0 %638
        %643 = vst [vmem:[#allocation1] ss:$2 sm:$0xff] %v635
        %s644 = scalar_lea.vmem [#allocation1], 16
        %645 = vst [vmem:[%s644] ss:$2 sm:$0xff] %v636
        %v646 = vld.sshfl [vmem:[#allocation1] sm:$0xff pattern:$0x75316420]
        %v647 = vld.sshfl [vmem:[#allocation1 + $0x8] sm:$0xff pattern:$0x75316420]
        %v648 = vld.sshfl [vmem:[#allocation1 + $0x10] sm:$0xff pattern:$0x75316420]
        %649 = vrot.lane.b32.xlu0 %v646, 33
        %v650 = vpop.permute.xlu0 %649
        %651 = vrot.lane.b32.xlu0 %v647, 33
        %v652 = vpop.permute.xlu0 %651
        %653 = vrot.lane.b32.xlu0 %v648, 33
        %v654 = vpop.permute.xlu0 %653
        %vm655 = vcmask 269312
        %v656 = vsel %vm655, %v650, %v652
        %v657 = vsel %vm655, %v652, %v654
        %v660 = vmul.f32 %v639, %v656
        %v661 = vmul.f32 %v639, %v657
        %v662 = vld [vmem:[#allocation2] sm:$0xff]
        %v663 = vld [vmem:[#allocation2 + $0x8] sm:$0xf]
        %664 = vset.pattern.permute.xlu0 6
        %665 = vperm.xlu0 %664, %v468
        %v666 = vpop.permute.xlu0 %665
        %670 = vst [vmem:[#allocation1] ss:$2 sm:$0xff] %v662
        %s671 = scalar_lea.vmem [#allocation1], 16
        %672 = vst [vmem:[%s671] ss:$2 sm:$0xff] %v663
        %v673 = vld.sshfl [vmem:[#allocation1] sm:$0xff pattern:$0x75316420]
        %v674 = vld.sshfl [vmem:[#allocation1 + $0x8] sm:$0xff pattern:$0x75316420]
        %v675 = vld.sshfl [vmem:[#allocation1 + $0x10] sm:$0xff pattern:$0x75316420]
        %676 = vrot.lane.b32.xlu0 %v673, 17
        %v677 = vpop.permute.xlu0 %676
        %678 = vrot.lane.b32.xlu0 %v674, 17
        %v679 = vpop.permute.xlu0 %678
        %680 = vrot.lane.b32.xlu0 %v675, 17
        %v681 = vpop.permute.xlu0 %680
        %vm682 = vcmask 138240
        %v683 = vsel %vm682, %v677, %v679
        %v684 = vsel %vm682, %v679, %v681
        %v687 = vmul.f32 %v666, %v683
        %v688 = vmul.f32 %v666, %v684
        %v689 = vadd.f32 %v660, %v687
        %v690 = vadd.f32 %v661, %v688
        %v691 = vld [vmem:[#allocation2] sm:$0xff]
        %v692 = vld [vmem:[#allocation2 + $0x8] sm:$0xf]
        %693 = vset.pattern.permute.xlu0 11
        %694 = vperm.xlu0 %693, %v468
        %v695 = vpop.permute.xlu0 %694
        %699 = vst [vmem:[#allocation1] ss:$2 sm:$0xff] %v691
        %s700 = scalar_lea.vmem [#allocation1], 16
        %701 = vst [vmem:[%s700] ss:$2 sm:$0xff] %v692
        %v702 = vld.sshfl [vmem:[#allocation1] sm:$0xff pattern:$0x75316420]
        %v703 = vld.sshfl [vmem:[#allocation1 + $0x8] sm:$0xff pattern:$0x75316420]
        %v704 = vld.sshfl [vmem:[#allocation1 + $0x10] sm:$0xff pattern:$0x75316420]
        %705 = vrot.lane.b32.xlu0 %v702, 1
        %v706 = vpop.permute.xlu0 %705
        %707 = vrot.lane.b32.xlu0 %v703, 1
        %v708 = vpop.permute.xlu0 %707
        %709 = vrot.lane.b32.xlu0 %v704, 1
        %v710 = vpop.permute.xlu0 %709
        %vm711 = vcmask 7168
        %v712 = vsel %vm711, %v706, %v708
        %v713 = vsel %vm711, %v708, %v710
        %v716 = vmul.f32 %v695, %v712
        %v717 = vmul.f32 %v695, %v713
        %v718 = vadd.f32 %v689, %v716
        %v719 = vadd.f32 %v690, %v717
        %v720 = vld [vmem:[#allocation2 + $0x4] sm:$0xff]
        %v721 = vld [vmem:[#allocation2 + $0xc] sm:$0xf]
        %722 = vset.pattern.permute.xlu0 16
        %723 = vperm.xlu0 %722, %v468
        %v724 = vpop.permute.xlu0 %723
        %728 = vst [vmem:[#allocation1] ss:$2 sm:$0xff] %v720
        %s729 = scalar_lea.vmem [#allocation1], 16
        %730 = vst [vmem:[%s729] ss:$2 sm:$0xff] %v721
        %v731 = vld.sshfl [vmem:[#allocation1] sm:$0xff pattern:$0x75316420]
        %v732 = vld.sshfl [vmem:[#allocation1 + $0x8] sm:$0xff pattern:$0x75316420]
        %v733 = vld.sshfl [vmem:[#allocation1 + $0x10] sm:$0xff pattern:$0x75316420]
        %734 = vrot.lane.b32.xlu0 %v731, 113
        %v735 = vpop.permute.xlu0 %734
        %736 = vrot.lane.b32.xlu0 %v732, 113
        %v737 = vpop.permute.xlu0 %736
        %738 = vrot.lane.b32.xlu0 %v733, 113
        %v739 = vpop.permute.xlu0 %738
        %vm740 = vcmask 924672
        %v741 = vsel %vm740, %v735, %v737
        %v742 = vsel %vm740, %v737, %v739
        %v745 = vmul.f32 %v724, %v741
        %v746 = vmul.f32 %v724, %v742
        %v747 = vadd.f32 %v718, %v745
        %v748 = vadd.f32 %v719, %v746
        %v749 = vld [vmem:[#allocation2 + $0x4] sm:$0xff]
        %v750 = vld [vmem:[#allocation2 + $0xc] sm:$0xf]
        %751 = vset.pattern.permute.xlu0 21
        %752 = vperm.xlu0 %751, %v468
        %v753 = vpop.permute.xlu0 %752
        %757 = vst [vmem:[#allocation1] ss:$2 sm:$0xff] %v749
        %s758 = scalar_lea.vmem [#allocation1], 16
        %759 = vst [vmem:[%s758] ss:$2 sm:$0xff] %v750
        %v760 = vld.sshfl [vmem:[#allocation1] sm:$0xff pattern:$0x75316420]
        %v761 = vld.sshfl [vmem:[#allocation1 + $0x8] sm:$0xff pattern:$0x75316420]
        %v762 = vld.sshfl [vmem:[#allocation1 + $0x10] sm:$0xff pattern:$0x75316420]
        %763 = vrot.lane.b32.xlu0 %v760, 97
        %v764 = vpop.permute.xlu0 %763
        %765 = vrot.lane.b32.xlu0 %v761, 97
        %v766 = vpop.permute.xlu0 %765
        %767 = vrot.lane.b32.xlu0 %v762, 97
        %v768 = vpop.permute.xlu0 %767
        %vm769 = vcmask 793600
        %v770 = vsel %vm769, %v764, %v766
        %v771 = vsel %vm769, %v766, %v768
        %v774 = vmul.f32 %v753, %v770
        %v775 = vmul.f32 %v753, %v771
        %v776 = vadd.f32 %v747, %v774
        %v777 = vadd.f32 %v748, %v775
        %v778 = vadd.s32 %v466, 4294967295
        %v779 = vadd.s32 %v467, 4294967295
        %vm780 = vcmp.ge.s32.totalorder %v778, 0
        %vm781 = vcmp.ge.s32.totalorder %v779, 0
        %vm782 = vcmp.lt.s32.totalorder %v778, 16
        %vm783 = vcmp.lt.s32.totalorder %v779, 16
        %vm784 = vmand %vm780, %vm782
        %vm785 = vmand %vm781, %vm783
        %v786 = vsel %vm784, 1, 0
        %v787 = vsel %vm785, 1, 0
        %v788 = vcvt.s32.f32 %v786
        %v789 = vcvt.s32.f32 %v787
        %v790 = vmul.f32 %v788, %v776
        %v791 = vmul.f32 %v789, %v777
        %v792 = vadd.f32 %v633, %v790
        %v793 = vadd.f32 %v634, %v791
        %v794 = vld [vmem:[#allocation2] sm:$0xff]
        %v795 = vld [vmem:[#allocation2 + $0x8] sm:$0xf]
        %796 = vset.pattern.permute.xlu0 2
        %797 = vperm.xlu0 %796, %v468
        %v798 = vpop.permute.xlu0 %797
        %802 = vst [vmem:[#allocation1] ss:$2 sm:$0xff] %v794
        %s803 = scalar_lea.vmem [#allocation1], 16
        %804 = vst [vmem:[%s803] ss:$2 sm:$0xff] %v795
        %v805 = vld.sshfl [vmem:[#allocation1] sm:$0xff pattern:$0x75316420]
        %v806 = vld.sshfl [vmem:[#allocation1 + $0x8] sm:$0xff pattern:$0x75316420]
        %v807 = vld.sshfl [vmem:[#allocation1 + $0x10] sm:$0xff pattern:$0x75316420]
        %808 = vrot.lane.b32.xlu0 %v805, 32
        %v809 = vpop.permute.xlu0 %808
        %810 = vrot.lane.b32.xlu0 %v806, 32
        %v811 = vpop.permute.xlu0 %810
        %812 = vrot.lane.b32.xlu0 %v807, 32
        %v813 = vpop.permute.xlu0 %812
        %vm814 = vcmask 261120
        %v815 = vsel %vm814, %v809, %v811
        %v816 = vsel %vm814, %v811, %v813
        %v819 = vmul.f32 %v798, %v815
        %v820 = vmul.f32 %v798, %v816
        %v821 = vld [vmem:[#allocation2] sm:$0xff]
        %v822 = vld [vmem:[#allocation2 + $0x8] sm:$0xf]
        %823 = vset.pattern.permute.xlu0 7
        %824 = vperm.xlu0 %823, %v468
        %v825 = vpop.permute.xlu0 %824
        %829 = vst [vmem:[#allocation1] ss:$2 sm:$0xff] %v821
        %s830 = scalar_lea.vmem [#allocation1], 16
        %831 = vst [vmem:[%s830] ss:$2 sm:$0xff] %v822
        %v832 = vld.sshfl [vmem:[#allocation1] sm:$0xff pattern:$0x75316420]
        %v833 = vld.sshfl [vmem:[#allocation1 + $0x8] sm:$0xff pattern:$0x75316420]
        %v834 = vld.sshfl [vmem:[#allocation1 + $0x10] sm:$0xff pattern:$0x75316420]
        %835 = vrot.lane.b32.xlu0 %v832, 16
        %v836 = vpop.permute.xlu0 %835
        %837 = vrot.lane.b32.xlu0 %v833, 16
        %v838 = vpop.permute.xlu0 %837
        %839 = vrot.lane.b32.xlu0 %v834, 16
        %v840 = vpop.permute.xlu0 %839
        %vm841 = vcmask 130048
        %v842 = vsel %vm841, %v836, %v838
        %v843 = vsel %vm841, %v838, %v840
        %v846 = vmul.f32 %v825, %v842
        %v847 = vmul.f32 %v825, %v843
        %v848 = vadd.f32 %v819, %v846
        %v849 = vadd.f32 %v820, %v847
        %v850 = vld [vmem:[#allocation2 + $0x4] sm:$0xff]
        %851 = vset.pattern.permute.xlu0 12
        %852 = vperm.xlu0 %851, %v468
        %v853 = vpop.permute.xlu0 %852
        %856 = vst [vmem:[#allocation1] ss:$2 sm:$0xff] %v850
        %v857 = vld.sshfl [vmem:[#allocation1] sm:$0xff pattern:$0x75316420]
        %v858 = vld.sshfl [vmem:[#allocation1 + $0x8] sm:$0xff pattern:$0x75316420]
        %v861 = vmul.f32 %v853, %v857
        %v862 = vmul.f32 %v853, %v858
        %v863 = vadd.f32 %v848, %v861
        %v864 = vadd.f32 %v849, %v862
        %v865 = vld [vmem:[#allocation2 + $0x4] sm:$0xff]
        %v866 = vld [vmem:[#allocation2 + $0xc] sm:$0xf]
        %867 = vset.pattern.permute.xlu0 17
        %868 = vperm.xlu0 %867, %v468
        %v869 = vpop.permute.xlu0 %868
        %873 = vst [vmem:[#allocation1] ss:$2 sm:$0xff] %v865
        %s874 = scalar_lea.vmem [#allocation1], 16
        %875 = vst [vmem:[%s874] ss:$2 sm:$0xff] %v866
        %v876 = vld.sshfl [vmem:[#allocation1] sm:$0xff pattern:$0x75316420]
        %v877 = vld.sshfl [vmem:[#allocation1 + $0x8] sm:$0xff pattern:$0x75316420]
        %v878 = vld.sshfl [vmem:[#allocation1 + $0x10] sm:$0xff pattern:$0x75316420]
        %879 = vrot.lane.b32.xlu0 %v876, 112
        %v880 = vpop.permute.xlu0 %879
        %881 = vrot.lane.b32.xlu0 %v877, 112
        %v882 = vpop.permute.xlu0 %881
        %883 = vrot.lane.b32.xlu0 %v878, 112
        %v884 = vpop.permute.xlu0 %883
        %vm885 = vcmask 916480
        %v886 = vsel %vm885, %v880, %v882
        %v887 = vsel %vm885, %v882, %v884
        %v890 = vmul.f32 %v869, %v886
        %v891 = vmul.f32 %v869, %v887
        %v892 = vadd.f32 %v863, %v890
        %v893 = vadd.f32 %v864, %v891
        %v894 = vld [vmem:[#allocation2 + $0x4] sm:$0xff]
        %v895 = vld [vmem:[#allocation2 + $0xc] sm:$0xf]
        %896 = vset.pattern.permute.xlu0 22
        %897 = vperm.xlu0 %896, %v468
        %v898 = vpop.permute.xlu0 %897
        %902 = vst [vmem:[#allocation1] ss:$2 sm:$0xff] %v894
        %s903 = scalar_lea.vmem [#allocation1], 16
        %904 = vst [vmem:[%s903] ss:$2 sm:$0xff] %v895
        %v905 = vld.sshfl [vmem:[#allocation1] sm:$0xff pattern:$0x75316420]
        %v906 = vld.sshfl [vmem:[#allocation1 + $0x8] sm:$0xff pattern:$0x75316420]
        %v907 = vld.sshfl [vmem:[#allocation1 + $0x10] sm:$0xff pattern:$0x75316420]
        %908 = vrot.lane.b32.xlu0 %v905, 96
        %v909 = vpop.permute.xlu0 %908
        %910 = vrot.lane.b32.xlu0 %v906, 96
        %v911 = vpop.permute.xlu0 %910
        %912 = vrot.lane.b32.xlu0 %v907, 96
        %v913 = vpop.permute.xlu0 %912
        %vm914 = vcmask 785408
        %v915 = vsel %vm914, %v909, %v911
        %v916 = vsel %vm914, %v911, %v913
        %v919 = vmul.f32 %v898, %v915
        %v920 = vmul.f32 %v898, %v916
        %v921 = vadd.f32 %v892, %v919
        %v922 = vadd.f32 %v893, %v920
        %v923 = vadd.f32 %v792, %v921
        %v924 = vadd.f32 %v793, %v922
        %v925 = vld [vmem:[#allocation2] sm:$0xff]
        %v926 = vld [vmem:[#allocation2 + $0x8] sm:$0xf]
        %927 = vset.pattern.permute.xlu0 3
        %928 = vperm.xlu0 %927, %v468
        %v929 = vpop.permute.xlu0 %928
        %933 = vst [vmem:[#allocation1] ss:$2 sm:$0xff] %v925
        %s934 = scalar_lea.vmem [#allocation1], 16
        %935 = vst [vmem:[%s934] ss:$2 sm:$0xff] %v926
        %v936 = vld.sshfl [vmem:[#allocation1] sm:$0xff pattern:$0x75316420]
        %v937 = vld.sshfl [vmem:[#allocation1 + $0x8] sm:$0xff pattern:$0x75316420]
        %v938 = vld.sshfl [vmem:[#allocation1 + $0x10] sm:$0xff pattern:$0x75316420]
        %939 = vrot.lane.b32.xlu0 %v936, 31
        %v940 = vpop.permute.xlu0 %939
        %941 = vrot.lane.b32.xlu0 %v937, 31
        %v942 = vpop.permute.xlu0 %941
        %943 = vrot.lane.b32.xlu0 %v938, 31
        %v944 = vpop.permute.xlu0 %943
        %vm945 = vcmask 252928
        %v946 = vsel %vm945, %v940, %v942
        %v947 = vsel %vm945, %v942, %v944
        %v950 = vmul.f32 %v929, %v946
        %v951 = vmul.f32 %v929, %v947
        %v952 = vld [vmem:[#allocation2] sm:$0xff]
        %v953 = vld [vmem:[#allocation2 + $0x8] sm:$0xf]
        %954 = vset.pattern.permute.xlu0 8
        %955 = vperm.xlu0 %954, %v468
        %v956 = vpop.permute.xlu0 %955
        %960 = vst [vmem:[#allocation1] ss:$2 sm:$0xff] %v952
        %s961 = scalar_lea.vmem [#allocation1], 16
        %962 = vst [vmem:[%s961] ss:$2 sm:$0xff] %v953
        %v963 = vld.sshfl [vmem:[#allocation1] sm:$0xff pattern:$0x75316420]
        %v964 = vld.sshfl [vmem:[#allocation1 + $0x8] sm:$0xff pattern:$0x75316420]
        %v965 = vld.sshfl [vmem:[#allocation1 + $0x10] sm:$0xff pattern:$0x75316420]
        %966 = vrot.lane.b32.xlu0 %v963, 15
        %v967 = vpop.permute.xlu0 %966
        %968 = vrot.lane.b32.xlu0 %v964, 15
        %v969 = vpop.permute.xlu0 %968
        %970 = vrot.lane.b32.xlu0 %v965, 15
        %v971 = vpop.permute.xlu0 %970
        %vm972 = vcmask 121856
        %v973 = vsel %vm972, %v967, %v969
        %v974 = vsel %vm972, %v969, %v971
        %v977 = vmul.f32 %v956, %v973
        %v978 = vmul.f32 %v956, %v974
        %v979 = vadd.f32 %v950, %v977
        %v980 = vadd.f32 %v951, %v978
        %v981 = vld [vmem:[#allocation2 + $0x4] sm:$0xff]
        %v982 = vld [vmem:[#allocation2 + $0xc] sm:$0xf]
        %983 = vset.pattern.permute.xlu0 13
        %984 = vperm.xlu0 %983, %v468
        %v985 = vpop.permute.xlu0 %984
        %989 = vst [vmem:[#allocation1] ss:$2 sm:$0xff] %v981
        %s990 = scalar_lea.vmem [#allocation1], 16
        %991 = vst [vmem:[%s990] ss:$2 sm:$0xff] %v982
        %v992 = vld.sshfl [vmem:[#allocation1] sm:$0xff pattern:$0x75316420]
        %v993 = vld.sshfl [vmem:[#allocation1 + $0x8] sm:$0xff pattern:$0x75316420]
        %v994 = vld.sshfl [vmem:[#allocation1 + $0x10] sm:$0xff pattern:$0x75316420]
        %995 = vrot.lane.b32.xlu0 %v992, 127
        %v996 = vpop.permute.xlu0 %995
        %997 = vrot.lane.b32.xlu0 %v993, 127
        %v998 = vpop.permute.xlu0 %997
        %999 = vrot.lane.b32.xlu0 %v994, 127
        %v1000 = vpop.permute.xlu0 %999
        %vm1001 = vcmask 1039360
        %v1002 = vsel %vm1001, %v996, %v998
        %v1003 = vsel %vm1001, %v998, %v1000
        %v1006 = vmul.f32 %v985, %v1002
        %v1007 = vmul.f32 %v985, %v1003
        %v1008 = vadd.f32 %v979, %v1006
        %v1009 = vadd.f32 %v980, %v1007
        %v1010 = vld [vmem:[#allocation2 + $0x4] sm:$0xff]
        %v1011 = vld [vmem:[#allocation2 + $0xc] sm:$0xf]
        %1012 = vset.pattern.permute.xlu0 18
        %1013 = vperm.xlu0 %1012, %v468
        %v1014 = vpop.permute.xlu0 %1013
        %1018 = vst [vmem:[#allocation1] ss:$2 sm:$0xff] %v1010
        %s1019 = scalar_lea.vmem [#allocation1], 16
        %1020 = vst [vmem:[%s1019] ss:$2 sm:$0xff] %v1011
        %v1021 = vld.sshfl [vmem:[#allocation1] sm:$0xff pattern:$0x75316420]
        %v1022 = vld.sshfl [vmem:[#allocation1 + $0x8] sm:$0xff pattern:$0x75316420]
        %v1023 = vld.sshfl [vmem:[#allocation1 + $0x10] sm:$0xff pattern:$0x75316420]
        %1024 = vrot.lane.b32.xlu0 %v1021, 111
        %v1025 = vpop.permute.xlu0 %1024
        %1026 = vrot.lane.b32.xlu0 %v1022, 111
        %v1027 = vpop.permute.xlu0 %1026
        %1028 = vrot.lane.b32.xlu0 %v1023, 111
        %v1029 = vpop.permute.xlu0 %1028
        %vm1030 = vcmask 908288
        %v1031 = vsel %vm1030, %v1025, %v1027
        %v1032 = vsel %vm1030, %v1027, %v1029
        %v1035 = vmul.f32 %v1014, %v1031
        %v1036 = vmul.f32 %v1014, %v1032
        %v1037 = vadd.f32 %v1008, %v1035
        %v1038 = vadd.f32 %v1009, %v1036
        %v1039 = vld [vmem:[#allocation2 + $0x4] sm:$0xff]
        %v1040 = vld [vmem:[#allocation2 + $0xc] sm:$0xf]
        %1041 = vset.pattern.permute.xlu0 23
        %1042 = vperm.xlu0 %1041, %v468
        %v1043 = vpop.permute.xlu0 %1042
        %1047 = vst [vmem:[#allocation1] ss:$2 sm:$0xff] %v1039
        %s1048 = scalar_lea.vmem [#allocation1], 16
        %1049 = vst [vmem:[%s1048] ss:$2 sm:$0xff] %v1040
        %v1050 = vld.sshfl [vmem:[#allocation1] sm:$0xff pattern:$0x75316420]
        %v1051 = vld.sshfl [vmem:[#allocation1 + $0x8] sm:$0xff pattern:$0x75316420]
        %v1052 = vld.sshfl [vmem:[#allocation1 + $0x10] sm:$0xff pattern:$0x75316420]
        %1053 = vrot.lane.b32.xlu0 %v1050, 95
        %v1054 = vpop.permute.xlu0 %1053
        %1055 = vrot.lane.b32.xlu0 %v1051, 95
        %v1056 = vpop.permute.xlu0 %1055
        %1057 = vrot.lane.b32.xlu0 %v1052, 95
        %v1058 = vpop.permute.xlu0 %1057
        %vm1059 = vcmask 777216
        %v1060 = vsel %vm1059, %v1054, %v1056
        %v1061 = vsel %vm1059, %v1056, %v1058
        %v1064 = vmul.f32 %v1043, %v1060
        %v1065 = vmul.f32 %v1043, %v1061
        %v1066 = vadd.f32 %v1037, %v1064
        %v1067 = vadd.f32 %v1038, %v1065
        %v1068 = vadd.s32 %v466, 1
        %v1069 = vadd.s32 %v467, 1
        %vm1070 = vcmp.ge.s32.totalorder %v1068, 0
        %vm1071 = vcmp.ge.s32.totalorder %v1069, 0
        %vm1072 = vcmp.lt.s32.totalorder %v1068, 16
        %vm1073 = vcmp.lt.s32.totalorder %v1069, 16
        %vm1074 = vmand %vm1070, %vm1072
        %vm1075 = vmand %vm1071, %vm1073
        %v1076 = vsel %vm1074, 1, 0
        %v1077 = vsel %vm1075, 1, 0
        %v1078 = vcvt.s32.f32 %v1076
        %v1079 = vcvt.s32.f32 %v1077
        %v1080 = vmul.f32 %v1078, %v1066
        %v1081 = vmul.f32 %v1079, %v1067
        %v1082 = vadd.f32 %v923, %v1080
        %v1083 = vadd.f32 %v924, %v1081
        %v1084 = vld [vmem:[#allocation2] sm:$0xff]
        %v1085 = vld [vmem:[#allocation2 + $0x8] sm:$0xf]
        %1086 = vset.pattern.permute.xlu0 4
        %1087 = vperm.xlu0 %1086, %v468
        %v1088 = vpop.permute.xlu0 %1087
        %1092 = vst [vmem:[#allocation1] ss:$2 sm:$0xff] %v1084
        %s1093 = scalar_lea.vmem [#allocation1], 16
        %1094 = vst [vmem:[%s1093] ss:$2 sm:$0xff] %v1085
        %v1095 = vld.sshfl [vmem:[#allocation1] sm:$0xff pattern:$0x75316420]
        %v1096 = vld.sshfl [vmem:[#allocation1 + $0x8] sm:$0xff pattern:$0x75316420]
        %v1097 = vld.sshfl [vmem:[#allocation1 + $0x10] sm:$0xff pattern:$0x75316420]
        %1098 = vrot.lane.b32.xlu0 %v1095, 30
        %v1099 = vpop.permute.xlu0 %1098
        %1100 = vrot.lane.b32.xlu0 %v1096, 30
        %v1101 = vpop.permute.xlu0 %1100
        %1102 = vrot.lane.b32.xlu0 %v1097, 30
        %v1103 = vpop.permute.xlu0 %1102
        %vm1104 = vcmask 244736
        %v1105 = vsel %vm1104, %v1099, %v1101
        %v1106 = vsel %vm1104, %v1101, %v1103
        %v1109 = vmul.f32 %v1088, %v1105
        %v1110 = vmul.f32 %v1088, %v1106
        %v1111 = vld [vmem:[#allocation2] sm:$0xff]
        %v1112 = vld [vmem:[#allocation2 + $0x8] sm:$0xf]
        %1113 = vset.pattern.permute.xlu0 9
        %1114 = vperm.xlu0 %1113, %v468
        %v1115 = vpop.permute.xlu0 %1114
        %1119 = vst [vmem:[#allocation1] ss:$2 sm:$0xff] %v1111
        %s1120 = scalar_lea.vmem [#allocation1], 16
        %1121 = vst [vmem:[%s1120] ss:$2 sm:$0xff] %v1112
        %v1122 = vld.sshfl [vmem:[#allocation1] sm:$0xff pattern:$0x75316420]
        %v1123 = vld.sshfl [vmem:[#allocation1 + $0x8] sm:$0xff pattern:$0x75316420]
        %v1124 = vld.sshfl [vmem:[#allocation1 + $0x10] sm:$0xff pattern:$0x75316420]
        %1125 = vrot.lane.b32.xlu0 %v1122, 14
        %v1126 = vpop.permute.xlu0 %1125
        %1127 = vrot.lane.b32.xlu0 %v1123, 14
        %v1128 = vpop.permute.xlu0 %1127
        %1129 = vrot.lane.b32.xlu0 %v1124, 14
        %v1130 = vpop.permute.xlu0 %1129
        %vm1131 = vcmask 113664
        %v1132 = vsel %vm1131, %v1126, %v1128
        %v1133 = vsel %vm1131, %v1128, %v1130
        %v1136 = vmul.f32 %v1115, %v1132
        %v1137 = vmul.f32 %v1115, %v1133
        %v1138 = vadd.f32 %v1109, %v1136
        %v1139 = vadd.f32 %v1110, %v1137
        %v1140 = vld [vmem:[#allocation2 + $0x4] sm:$0xff]
        %v1141 = vld [vmem:[#allocation2 + $0xc] sm:$0xf]
        %1142 = vset.pattern.permute.xlu0 14
        %1143 = vperm.xlu0 %1142, %v468
        %v1144 = vpop.permute.xlu0 %1143
        %1148 = vst [vmem:[#allocation1] ss:$2 sm:$0xff] %v1140
        %s1149 = scalar_lea.vmem [#allocation1], 16
        %1150 = vst [vmem:[%s1149] ss:$2 sm:$0xff] %v1141
        %v1151 = vld.sshfl [vmem:[#allocation1] sm:$0xff pattern:$0x75316420]
        %v1152 = vld.sshfl [vmem:[#allocation1 + $0x8] sm:$0xff pattern:$0x75316420]
        %v1153 = vld.sshfl [vmem:[#allocation1 + $0x10] sm:$0xff pattern:$0x75316420]
        %1154 = vrot.lane.b32.xlu0 %v1151, 126
        %v1155 = vpop.permute.xlu0 %1154
        %1156 = vrot.lane.b32.xlu0 %v1152, 126
        %v1157 = vpop.permute.xlu0 %1156
        %1158 = vrot.lane.b32.xlu0 %v1153, 126
        %v1159 = vpop.permute.xlu0 %1158
        %vm1160 = vcmask 1031168
        %v1161 = vsel %vm1160, %v1155, %v1157
        %v1162 = vsel %vm1160, %v1157, %v1159
        %v1165 = vmul.f32 %v1144, %v1161
        %v1166 = vmul.f32 %v1144, %v1162
        %v1167 = vadd.f32 %v1138, %v1165
        %v1168 = vadd.f32 %v1139, %v1166
        %v1169 = vld [vmem:[#allocation2 + $0x4] sm:$0xff]
        %v1170 = vld [vmem:[#allocation2 + $0xc] sm:$0xf]
        %1171 = vset.pattern.permute.xlu0 19
        %1172 = vperm.xlu0 %1171, %v468
        %v1173 = vpop.permute.xlu0 %1172
        %1177 = vst [vmem:[#allocation1] ss:$2 sm:$0xff] %v1169
        %s1178 = scalar_lea.vmem [#allocation1], 16
        %1179 = vst [vmem:[%s1178] ss:$2 sm:$0xff] %v1170
        %v1180 = vld.sshfl [vmem:[#allocation1] sm:$0xff pattern:$0x75316420]
        %v1181 = vld.sshfl [vmem:[#allocation1 + $0x8] sm:$0xff pattern:$0x75316420]
        %v1182 = vld.sshfl [vmem:[#allocation1 + $0x10] sm:$0xff pattern:$0x75316420]
        %1183 = vrot.lane.b32.xlu0 %v1180, 110
        %v1184 = vpop.permute.xlu0 %1183
        %1185 = vrot.lane.b32.xlu0 %v1181, 110
        %v1186 = vpop.permute.xlu0 %1185
        %1187 = vrot.lane.b32.xlu0 %v1182, 110
        %v1188 = vpop.permute.xlu0 %1187
        %vm1189 = vcmask 900096
        %v1190 = vsel %vm1189, %v1184, %v1186
        %v1191 = vsel %vm1189, %v1186, %v1188
        %v1194 = vmul.f32 %v1173, %v1190
        %v1195 = vmul.f32 %v1173, %v1191
        %v1196 = vadd.f32 %v1167, %v1194
        %v1197 = vadd.f32 %v1168, %v1195
        %v1198 = vld [vmem:[#allocation2 + $0x4] sm:$0xff]
        %v1199 = vld [vmem:[#allocation2 + $0xc] sm:$0xf]
        %1200 = vset.pattern.permute.xlu0 24
        %1201 = vperm.xlu0 %1200, %v468
        %v1202 = vpop.permute.xlu0 %1201
        %1206 = vst [vmem:[#allocation1] ss:$2 sm:$0xff] %v1198
        %s1207 = scalar_lea.vmem [#allocation1], 16
        %1208 = vst [vmem:[%s1207] ss:$2 sm:$0xff] %v1199
        %v1209 = vld.sshfl [vmem:[#allocation1] sm:$0xff pattern:$0x75316420]
        %v1210 = vld.sshfl [vmem:[#allocation1 + $0x8] sm:$0xff pattern:$0x75316420]
        %v1211 = vld.sshfl [vmem:[#allocation1 + $0x10] sm:$0xff pattern:$0x75316420]
        %1212 = vrot.lane.b32.xlu0 %v1209, 94
        %v1213 = vpop.permute.xlu0 %1212
        %1214 = vrot.lane.b32.xlu0 %v1210, 94
        %v1215 = vpop.permute.xlu0 %1214
        %1216 = vrot.lane.b32.xlu0 %v1211, 94
        %v1217 = vpop.permute.xlu0 %1216
        %vm1218 = vcmask 769024
        %v1219 = vsel %vm1218, %v1213, %v1215
        %v1220 = vsel %vm1218, %v1215, %v1217
        %v1223 = vmul.f32 %v1202, %v1219
        %v1224 = vmul.f32 %v1202, %v1220
        %v1225 = vadd.f32 %v1196, %v1223
        %v1226 = vadd.f32 %v1197, %v1224
        %v1227 = vadd.s32 %v466, 2
        %v1228 = vadd.s32 %v467, 2
        %vm1229 = vcmp.ge.s32.totalorder %v1227, 0
        %vm1230 = vcmp.ge.s32.totalorder %v1228, 0
        %vm1231 = vcmp.lt.s32.totalorder %v1227, 16
        %vm1232 = vcmp.lt.s32.totalorder %v1228, 16
        %vm1233 = vmand %vm1229, %vm1231
        %vm1234 = vmand %vm1230, %vm1232
        %v1235 = vsel %vm1233, 1, 0
        %v1236 = vsel %vm1234, 1, 0
        %v1237 = vcvt.s32.f32 %v1235
        %v1238 = vcvt.s32.f32 %v1236
        %v1239 = vmul.f32 %v1237, %v1225
        %v1240 = vmul.f32 %v1238, %v1226
        %v1241 = vadd.f32 %v1082, %v1239
        %v1242 = vadd.f32 %v1083, %v1240
        %v1243 = vxor.u32 %v1241, 2147483648
        %v1244 = vxor.u32 %v1242, 2147483648
        %v1245 = vmul.f32 %v1243, 1.442695
        %v1246 = vpow.pop %v1245
        %v1247 = vmul.f32 %v1244, 1.442695
        %v1248 = vpow.pop %v1247
        %v1249 = vadd.f32 %v1246, 1.0
        %v1250 = vadd.f32 %v1248, 1.0
        %v1251 = vrcp.pop %v1249
        %v1252 = vmul.f32 %v1249, %v1251
        %v1253 = vsub.f32 1.0, %v1252
        %v1254 = vmul.f32 %v1251, %v1253
        %v1255 = vadd.f32 %v1251, %v1254
        %vm1256 = vweird.f32 %v1249
        %vm1257 = vweird.f32 %v1251
        %vm1258 = vmor %vm1256, %vm1257
        %v1259 = vsel %vm1258, %v1251, %v1255
        %v1260 = vand.u32 2147483647, %v1249
        %vm1261 = vcmp.eq.f32.partialorder %v1260, 8.507059e+37
        %v1262 = vand.u32 %v1249, 2147483648
        %v1263 = vor.u32 1.1754944e-38, %v1262
        %v1264 = vsel %vm1261, %v1263, %v1259
        %v1265 = vmul.f32 1.0, %v1264
        %v1266 = vrcp.pop %v1250
        %v1267 = vmul.f32 %v1250, %v1266
        %v1268 = vsub.f32 1.0, %v1267
        %v1269 = vmul.f32 %v1266, %v1268
        %v1270 = vadd.f32 %v1266, %v1269
        %vm1271 = vweird.f32 %v1250
        %vm1272 = vweird.f32 %v1266
        %vm1273 = vmor %vm1271, %vm1272
        %v1274 = vsel %vm1273, %v1266, %v1270
        %v1275 = vand.u32 2147483647, %v1250
        %vm1276 = vcmp.eq.f32.partialorder %v1275, 8.507059e+37
        %v1277 = vand.u32 %v1250, 2147483648
        %v1278 = vor.u32 1.1754944e-38, %v1277
        %v1279 = vsel %vm1276, %v1278, %v1274
        %v1280 = vmul.f32 1.0, %v1279
        %v1281 = vmul.f32 %v1241, %v1265
        %v1282 = vmul.f32 %v1242, %v1280
        %v1285 = vrot.slane %v1282, 4
        %v1286 = vsel %vm434, %v1281, %v1285
        %s1288 = scalar_lea.vmem %s308, 8 [#allocation6]
        %1289 = vst [vmem:[%s1288] sm:$0xff] %v1286
        %s1290 = sand.u32 %s174, 1
        %s1291 = scalar_lea.sflag [#allocation5], %s1290
        %s1292 = sand.u32 %s174, 1
        %s1293 = smul.addr %s1292, 16
        %s1294 = scalar_lea.vmem [#allocation6], %s1293
        // Predicated region
        $region45: #{tpu_custom_call.1} parent=39 // pred_check
          %p1295 = pneg %p184
        $region46: #{tpu_custom_call.1} parent=39 // pred_check_branch
          %1297 = sbr.rel (%p1295) target = $region48
        $region47: #{tpu_custom_call.1} parent=39 // pred_region
          %1299 = vsyncadd %s1291, 0
          %s1300 = smul.addr %s27, 2
          %s1301 = smul.addr %s26, 4
          %s1302 = sadd.s32 %s1300, %s1301
          %s1303 = smul.addr %s1302, 4
          %s1304 = scalar_lea.hbm %s5, %s1303
          %s1305 = sshll.u32 %s1294, 4
          %s1306 = int_to_ptr.vmem [resolvable:$true] %s1305
          %s1307 = sshll.u32 %s1304, 4
          %s1308 = int_to_ptr.hbm [resolvable:$true] %s1307
          %1313 = dma.vmem_to_hbm [thread:$0]  %s1306, 256, %s1308, %s1291, 128, 128, 8
        $region48: #{tpu_custom_call.1} parent=39 // pred_fallthru
          _
      $region40: #{tpu_custom_call.1} parent=5 // pred_fallthru
        _
      %p1314 = scmp.le.s32.totalorder 2, %s17
      // Predicated region
      $region49: #{tpu_custom_call.1} parent=5 // pred_check
        %p1315 = pneg %p1314
      $region50: #{tpu_custom_call.1} parent=5 // pred_check_branch
        %1317 = sbr.rel (%p1315) target = $region52
      $region51: #{tpu_custom_call.1} parent=5 // pred_region
        %s1318 = ssub.s32 %s17, 2
        // Predicated region
        $region53: #{tpu_custom_call.1} parent=51 // pred_check
          %p1319 = pneg %p190
        $region54: #{tpu_custom_call.1} parent=51 // pred_check_branch
          %1321 = sbr.rel (%p1319) target = $region56
        $region55: #{tpu_custom_call.1} parent=51 // pred_region
          %s1322 = sand.u32 %s175, 1
          %s1323 = scalar_lea.sflag [#allocation5], %s1322
          %s1324 = sand.u32 %s175, 1
          %s1325 = smul.addr %s1324, 16
          %s1326 = scalar_lea.vmem [#allocation6], %s1325
          %1328 = dma.done %s1323, 256
        $region56: #{tpu_custom_call.1} parent=51 // pred_fallthru
          _
      $region52: #{tpu_custom_call.1} parent=5 // pred_fallthru
        _
    $region6: #{tpu_custom_call.1} parent=1 // loop_footer
      %s21 = sadd.s32 1, %s17
    $region7: #{tpu_custom_call.1} parent=1 // loop_footer_branch
      %16 = sbr.rel target = $region3
    $region8: #{tpu_custom_call.1} parent=1 // loop_exit
      _
    %1329 = vsyncpa [#allocation4], 1
    %s1330 = scalar_lea.sflag [#allocation4], 1
    %1331 = vsyncpa %s1330, 1
    %1332 = vsyncpa [#allocation5], 1
    %s1333 = scalar_lea.sflag [#allocation5], 1
    %1334 = vsyncpa %s1333, 1

</llo_original>
